<compile_context>
chip_gen: v7x
topology: tpu7x:2x2x1
jax: 0.10.0
libtpu: 0.0.40
codegen_flags: <defaults>
</compile_context>

<pallas_src>
import functools

import jax
import jax.numpy as jnp
from jax.experimental import pallas as pl
from jax.experimental.pallas import tpu as pltpu


def _attention_down_kernel(x1_ref, x2_ref, a_ref,
                           w123_ref, b123_ref, wqkv_ref, bqkv_ref,
                           wo_ref, bo_ref, out_ref, *, num_heads):
  """One grid step processes a tile of ts positions for all B batch rows.

  All data is laid out channels-first: (features on sublanes, positions on
  lanes).  B and num_heads are small compile-time constants, so the Python
  loops below fully unroll at trace time.
  """
  B, cin, ts = x1_ref.shape
  E = wo_ref.shape[0]
  H = num_heads
  D = E // H
  f32 = jnp.float32
  bf16 = jnp.bfloat16

  # ---- per-batch per-position projections: (E, Cin) @ (Cin, ts) on the MXU ----
  w1 = w123_ref[0]
  w2 = w123_ref[1]
  w3 = w123_ref[2]
  gates = []          # h2 * ha, per batch, (E, ts) f32
  qs, ks, vs = [], [], []
  for b in range(B):
    x1 = x1_ref[b].astype(bf16)                       # (Cin, ts)
    x2 = x2_ref[b].astype(bf16)
    av = a_ref[b].astype(bf16)
    h1 = jnp.maximum(
        jnp.dot(w1, x1, preferred_element_type=f32) + b123_ref[0], 0.0)
    ha = jnp.maximum(
        jnp.dot(w2, av, preferred_element_type=f32) + b123_ref[1], 0.0)
    h2 = jnp.maximum(
        jnp.dot(w3, x2, preferred_element_type=f32) + b123_ref[2], 0.0)
    gates.append(h2 * ha)                             # (E, ts) f32

    # fused q/k/v projection (1/sqrt(D) pre-folded into the q rows/bias)
    qkv = jnp.dot(wqkv_ref[...], h1.astype(bf16),
                  preferred_element_type=f32) + bqkv_ref[...]   # (3E, ts)
    qs.append(qkv[0:E, :])
    ks.append(qkv[E:2 * E, :])
    vs.append(qkv[2 * E:3 * E, :])

  # ---- multi-head attention over the batch axis (sequence length == B) ----
  for i in range(B):
    # scores s[j][h]: (1, ts) — VPU multiply + sublane (XLU) reduction over D
    s = [[jnp.sum(qs[i][h * D:(h + 1) * D, :] * ks[j][h * D:(h + 1) * D, :],
                  axis=0, keepdims=True)
          for h in range(H)]
         for j in range(B)]

    ctx_heads = []
    for h in range(H):
      # numerically stable softmax over j, all on (1, ts) tensors
      m = s[0][h]
      for j in range(1, B):
        m = jnp.maximum(m, s[j][h])
      e = [jnp.exp(s[j][h] - m) for j in range(B)]
      den = e[0]
      for j in range(1, B):
        den = den + e[j]
      inv = pl.reciprocal(den, approx=True)           # EUP, not VPU divide
      # mix values: (1, ts) weight sublane-broadcast against (D, ts) v slice
      ctx_h = (e[0] * inv) * vs[0][h * D:(h + 1) * D, :]
      for j in range(1, B):
        ctx_h = ctx_h + (e[j] * inv) * vs[j][h * D:(h + 1) * D, :]
      ctx_heads.append(ctx_h)                         # (D, ts) f32

    ctx = jnp.concatenate(ctx_heads, axis=0)          # (E, ts)
    attn = jnp.dot(wo_ref[...], ctx.astype(bf16),
                   preferred_element_type=f32) + bo_ref[...]

    # ---- store directly in NCL layout: (E, ts) slab, lane-dense ----
    out_ref[i] = (attn + gates[i]).astype(out_ref.dtype)


def _pick_ts(S):
  """Largest lane-dense tile (multiple of 128) that keeps the grid >= 2."""
  for cand in (512, 256, 128):
    if S % cand == 0 and S // cand >= 2:
      return cand
  return S  # single whole-S tile (still satisfies BlockSpec constraints)


def attention_down(x, a, params, num_heads=4, ts=None):
  """x: (B, Cin, 2*S), a: (B, Cin, S)  ->  (B, E, S)   (PyTorch NCL layout)."""
  B, Cin, L = x.shape
  S = a.shape[2]
  assert L == 2 * S, "module's x2 * a broadcast requires x.shape[2] == 2*a.shape[2]"
  E = params["w1"].shape[0]
  H = num_heads
  D = E // H
  if ts is None:
    ts = _pick_ts(S)
  assert S % ts == 0
  assert ts % 128 == 0 or ts == S, "tile must be lane-dense or whole-S"
  assert Cin % 8 == 0 and E % 8 == 0
  nb = S // ts

  # Weights stay in their native (out, in) orientation; bf16 for the MXU.
  w123 = jnp.stack([params["w1"], params["w2"], params["w3"]]
                   ).astype(jnp.bfloat16)                      # (3, E, Cin)
  b123 = jnp.stack([params["b1"], params["b2"], params["b3"]]
                   )[:, :, None].astype(jnp.float32)           # (3, E, 1)

  scale = float(D) ** -0.5
  in_w, in_b = params["in_w"], params["in_b"]
  wqkv = jnp.concatenate([in_w[:E] * scale, in_w[E:]], axis=0
                         ).astype(jnp.bfloat16)                # (3E, E), scale folded
  bqkv = jnp.concatenate([in_b[:E] * scale, in_b[E:]]
                         ).reshape(3 * E, 1).astype(jnp.float32)
  wo = params["out_w"].astype(jnp.bfloat16)                    # (E, E)
  bo = params["out_b"].reshape(E, 1).astype(jnp.float32)

  def data_spec(block_off):
    # x / a consumed as-is (f32, channels-first); cast to bf16 in-kernel.
    return pl.BlockSpec((B, Cin, ts), lambda s: (0, 0, s + block_off))

  def full(arr):
    return pl.BlockSpec(arr.shape, lambda s: (0,) * arr.ndim)

  kernel = functools.partial(_attention_down_kernel, num_heads=H)

  return pl.pallas_call(
      kernel,
      out_shape=jax.ShapeDtypeStruct((B, E, S), jnp.float32),
      grid_spec=pltpu.PrefetchScalarGridSpec(
          num_scalar_prefetch=0,
          grid=(nb,),
          in_specs=[
              data_spec(0),        # x1 tile: first half of x (same array)
              data_spec(nb),       # x2 tile: second half of x (same array)
              data_spec(0),        # a tile
              full(w123), full(b123),
              full(wqkv), full(bqkv),
              full(wo), full(bo),
          ],
          out_specs=pl.BlockSpec((B, E, ts), lambda s: (0, 0, s)),
      ),
      compiler_params=pltpu.CompilerParams(
          dimension_semantics=("parallel",),
          vmem_limit_bytes=32 * 1024 * 1024),
  )(x, x, a, w123, b123, wqkv, bqkv, wo, bo)


def attention_down_reference(x, a, params, num_heads=4):
  """Pure-JAX mirror of the PyTorch forward (for verification)."""
  S = a.shape[2]
  E = params["w1"].shape[0]
  H = num_heads
  D = E // H
  x1, x2 = x[:, :, :S], x[:, :, S:]

  conv = lambda w, b, z: jnp.einsum("ec,bcl->bel", w, z) + b[None, :, None]
  h1 = jax.nn.relu(conv(params["w1"], params["b1"], x1))
  ha = jax.nn.relu(conv(params["w2"], params["b2"], a))
  h2 = jax.nn.relu(conv(params["w3"], params["b3"], x2))

  xt = jnp.transpose(h1, (0, 2, 1))           # (B, S, E) == (L, N, E) for MHA
  in_w, in_b = params["in_w"], params["in_b"]
  q = jnp.einsum("lne,fe->lnf", xt, in_w[:E]) + in_b[:E]
  k = jnp.einsum("lne,fe->lnf", xt, in_w[E:2 * E]) + in_b[E:2 * E]
  v = jnp.einsum("lne,fe->lnf", xt, in_w[2 * E:]) + in_b[2 * E:]
  q = q * (float(D) ** -0.5)
  Bn = xt.shape[0]
  qh, kh, vh = (z.reshape(Bn, S, H, D) for z in (q, k, v))
  scores = jnp.einsum("inhd,jnhd->nhij", qh, kh)
  w = jax.nn.softmax(scores, axis=-1)
  ctx = jnp.einsum("nhij,jnhd->inhd", w, vh).reshape(Bn, S, E)
  attn = jnp.einsum("lne,fe->lnf", ctx, params["out_w"]) + params["out_b"]
  return jnp.transpose(attn, (0, 2, 1)) + h2 * ha


def init_params(key, input_channels, embed_dim):
  ks = jax.random.split(key, 10)
  s = 0.08
  n = lambda k, shape: jax.random.normal(k, shape, jnp.float32) * s
  return {
      "w1": n(ks[0], (embed_dim, input_channels)),   # fc1 Conv1d weight (k=1)
      "b1": n(ks[1], (embed_dim,)),
      "w2": n(ks[2], (embed_dim, input_channels)),   # fc2
      "b2": n(ks[3], (embed_dim,)),
      "w3": n(ks[4], (embed_dim, input_channels)),   # fc3
      "b3": n(ks[5], (embed_dim,)),
      "in_w": n(ks[6], (3 * embed_dim, embed_dim)),  # MHA in_proj_weight
      "in_b": n(ks[7], (3 * embed_dim,)),            # MHA in_proj_bias
      "out_w": n(ks[8], (embed_dim, embed_dim)),     # MHA out_proj.weight
      "out_b": n(ks[9], (embed_dim,)),               # MHA out_proj.bias
  }


if __name__ == "__main__":
  key = jax.random.PRNGKey(0)
  k_param, k_x, k_a = jax.random.split(key, 3)

  B, Cin, E, H = 2, 64, 32, 4   # small analogue of input_size=(64,·), output_size=(32,·)
  S = 256                       # length of `a`; x has length 2*S; grid = 2 tiles of 128

  params = init_params(k_param, Cin, E)
  x = jax.random.normal(k_x, (B, Cin, 2 * S), jnp.float32)
  a = jax.random.normal(k_a, (B, Cin, S), jnp.float32)

  out = attention_down(x, a, params, num_heads=H)
  out = jax.block_until_ready(out)

  ref = attention_down_reference(x, a, params, num_heads=H)
  assert out.shape == (B, E, S)
  # bf16 MXU path + approx reciprocal -> slightly relaxed tolerance vs f32 ref.
  if not jnp.allclose(out, ref, atol=4e-2, rtol=4e-2):
    raise AssertionError(
        f"mismatch vs reference, max abs err = {jnp.max(jnp.abs(out - ref))}")
  print("KERNEL_OK")
</pallas_src>

<mosaic_0001>
module attributes {stable_mosaic.version = 11 : i64} {
  func.func @_attention_down_kernel(%arg0: i32, %arg1: memref<2x64x128xf32, #tpu.memory_space<vmem>>, %arg2: memref<2x64x128xf32, #tpu.memory_space<vmem>>, %arg3: memref<2x64x128xf32, #tpu.memory_space<vmem>>, %arg4: memref<3x32x64xbf16, #tpu.memory_space<vmem>>, %arg5: memref<3x32x1xf32, #tpu.memory_space<vmem>>, %arg6: memref<96x32xbf16, #tpu.memory_space<vmem>>, %arg7: memref<96x1xf32, #tpu.memory_space<vmem>>, %arg8: memref<32x32xbf16, #tpu.memory_space<vmem>>, %arg9: memref<32x1xf32, #tpu.memory_space<vmem>>, %arg10: memref<2x32x128xf32, #tpu.memory_space<vmem>>) attributes {dimension_semantics = [#tpu.dimension_semantics<parallel>], iteration_bounds = array<i64: 2>, scalar_prefetch = 0 : i64, scratch_operands = 0 : i64, tpu.core_type = #tpu.core_type<tc>, window_params = [{transform_indices = @transform_0, window_bounds = array<i64: 2, 64, 128>}, {transform_indices = @transform_1, window_bounds = array<i64: 2, 64, 128>}, {transform_indices = @transform_2, window_bounds = array<i64: 2, 64, 128>}, {pipeline_mode = #tpu.pipeline_mode<synchronous>, transform_indices = @transform_3, window_bounds = array<i64: 3, 32, 64>}, {pipeline_mode = #tpu.pipeline_mode<synchronous>, transform_indices = @transform_4, window_bounds = array<i64: 3, 32, 1>}, {pipeline_mode = #tpu.pipeline_mode<synchronous>, transform_indices = @transform_5, window_bounds = array<i64: 96, 32>}, {pipeline_mode = #tpu.pipeline_mode<synchronous>, transform_indices = @transform_6, window_bounds = array<i64: 96, 1>}, {pipeline_mode = #tpu.pipeline_mode<synchronous>, transform_indices = @transform_7, window_bounds = array<i64: 32, 32>}, {pipeline_mode = #tpu.pipeline_mode<synchronous>, transform_indices = @transform_8, window_bounds = array<i64: 32, 1>}, {transform_indices = @transform_9, window_bounds = array<i64: 2, 32, 128>}]} {
    %c0 = arith.constant 0 : index
    %c0_0 = arith.constant 0 : index
    %c0_1 = arith.constant 0 : index
    %0 = vector.load %arg4[%c0, %c0_0, %c0_1] : memref<3x32x64xbf16, #tpu.memory_space<vmem>>, vector<1x32x64xbf16>
    %1 = vector.shape_cast %0 : vector<1x32x64xbf16> to vector<32x64xbf16>
    %c1 = arith.constant 1 : index
    %c0_2 = arith.constant 0 : index
    %c0_3 = arith.constant 0 : index
    %2 = vector.load %arg4[%c1, %c0_2, %c0_3] : memref<3x32x64xbf16, #tpu.memory_space<vmem>>, vector<1x32x64xbf16>
    %3 = vector.shape_cast %2 : vector<1x32x64xbf16> to vector<32x64xbf16>
    %c2 = arith.constant 2 : index
    %c0_4 = arith.constant 0 : index
    %c0_5 = arith.constant 0 : index
    %4 = vector.load %arg4[%c2, %c0_4, %c0_5] : memref<3x32x64xbf16, #tpu.memory_space<vmem>>, vector<1x32x64xbf16>
    %5 = vector.shape_cast %4 : vector<1x32x64xbf16> to vector<32x64xbf16>
    %c0_6 = arith.constant 0 : index
    %c0_7 = arith.constant 0 : index
    %c0_8 = arith.constant 0 : index
    %6 = vector.load %arg1[%c0_6, %c0_7, %c0_8] : memref<2x64x128xf32, #tpu.memory_space<vmem>>, vector<1x64x128xf32>
    %7 = vector.shape_cast %6 : vector<1x64x128xf32> to vector<64x128xf32>
    %8 = arith.truncf %7 : vector<64x128xf32> to vector<64x128xbf16>
    %c0_9 = arith.constant 0 : index
    %c0_10 = arith.constant 0 : index
    %c0_11 = arith.constant 0 : index
    %9 = vector.load %arg2[%c0_9, %c0_10, %c0_11] : memref<2x64x128xf32, #tpu.memory_space<vmem>>, vector<1x64x128xf32>
    %10 = vector.shape_cast %9 : vector<1x64x128xf32> to vector<64x128xf32>
    %11 = arith.truncf %10 : vector<64x128xf32> to vector<64x128xbf16>
    %c0_12 = arith.constant 0 : index
    %c0_13 = arith.constant 0 : index
    %c0_14 = arith.constant 0 : index
    %12 = vector.load %arg3[%c0_12, %c0_13, %c0_14] : memref<2x64x128xf32, #tpu.memory_space<vmem>>, vector<1x64x128xf32>
    %13 = vector.shape_cast %12 : vector<1x64x128xf32> to vector<64x128xf32>
    %14 = arith.truncf %13 : vector<64x128xf32> to vector<64x128xbf16>
    %cst = arith.constant dense<0.000000e+00> : vector<32x128xf32>
    %15 = tpu.matmul %1, %8, %cst {dimension_numbers = #tpu.dot_dimension_numbers<[1], [0], [0], [1], [0, 0, 1, 1], [], []>} : vector<32x64xbf16>, vector<64x128xbf16>, vector<32x128xf32> -> vector<32x128xf32>
    %c0_15 = arith.constant 0 : index
    %c0_16 = arith.constant 0 : index
    %c0_17 = arith.constant 0 : index
    %16 = vector.load %arg5[%c0_15, %c0_16, %c0_17] : memref<3x32x1xf32, #tpu.memory_space<vmem>>, vector<1x32x1xf32>
    %17 = vector.shape_cast %16 : vector<1x32x1xf32> to vector<32x1xf32>
    %18 = vector.broadcast %17 : vector<32x1xf32> to vector<32x128xf32>
    %19 = arith.addf %15, %18 : vector<32x128xf32>
    %cst_18 = arith.constant 0.000000e+00 : f32
    %20 = vector.broadcast %cst_18 : f32 to vector<32x128xf32>
    %21 = arith.maximumf %19, %20 : vector<32x128xf32>
    %cst_19 = arith.constant dense<0.000000e+00> : vector<32x128xf32>
    %22 = tpu.matmul %3, %14, %cst_19 {dimension_numbers = #tpu.dot_dimension_numbers<[1], [0], [0], [1], [0, 0, 1, 1], [], []>} : vector<32x64xbf16>, vector<64x128xbf16>, vector<32x128xf32> -> vector<32x128xf32>
    %c1_20 = arith.constant 1 : index
    %c0_21 = arith.constant 0 : index
    %c0_22 = arith.constant 0 : index
    %23 = vector.load %arg5[%c1_20, %c0_21, %c0_22] : memref<3x32x1xf32, #tpu.memory_space<vmem>>, vector<1x32x1xf32>
    %24 = vector.shape_cast %23 : vector<1x32x1xf32> to vector<32x1xf32>
    %25 = vector.broadcast %24 : vector<32x1xf32> to vector<32x128xf32>
    %26 = arith.addf %22, %25 : vector<32x128xf32>
    %cst_23 = arith.constant 0.000000e+00 : f32
    %27 = vector.broadcast %cst_23 : f32 to vector<32x128xf32>
    %28 = arith.maximumf %26, %27 : vector<32x128xf32>
    %cst_24 = arith.constant dense<0.000000e+00> : vector<32x128xf32>
    %29 = tpu.matmul %5, %11, %cst_24 {dimension_numbers = #tpu.dot_dimension_numbers<[1], [0], [0], [1], [0, 0, 1, 1], [], []>} : vector<32x64xbf16>, vector<64x128xbf16>, vector<32x128xf32> -> vector<32x128xf32>
    %c2_25 = arith.constant 2 : index
    %c0_26 = arith.constant 0 : index
    %c0_27 = arith.constant 0 : index
    %30 = vector.load %arg5[%c2_25, %c0_26, %c0_27] : memref<3x32x1xf32, #tpu.memory_space<vmem>>, vector<1x32x1xf32>
    %31 = vector.shape_cast %30 : vector<1x32x1xf32> to vector<32x1xf32>
    %32 = vector.broadcast %31 : vector<32x1xf32> to vector<32x128xf32>
    %33 = arith.addf %29, %32 : vector<32x128xf32>
    %cst_28 = arith.constant 0.000000e+00 : f32
    %34 = vector.broadcast %cst_28 : f32 to vector<32x128xf32>
    %35 = arith.maximumf %33, %34 : vector<32x128xf32>
    %36 = arith.mulf %35, %28 : vector<32x128xf32>
    %c0_29 = arith.constant 0 : index
    %c0_30 = arith.constant 0 : index
    %37 = vector.load %arg6[%c0_29, %c0_30] : memref<96x32xbf16, #tpu.memory_space<vmem>>, vector<96x32xbf16>
    %38 = arith.truncf %21 : vector<32x128xf32> to vector<32x128xbf16>
    %cst_31 = arith.constant dense<0.000000e+00> : vector<96x128xf32>
    %39 = tpu.matmul %37, %38, %cst_31 {dimension_numbers = #tpu.dot_dimension_numbers<[1], [0], [0], [1], [0, 0, 1, 1], [], []>} : vector<96x32xbf16>, vector<32x128xbf16>, vector<96x128xf32> -> vector<96x128xf32>
    %c0_32 = arith.constant 0 : index
    %c0_33 = arith.constant 0 : index
    %40 = vector.load %arg7[%c0_32, %c0_33] : memref<96x1xf32, #tpu.memory_space<vmem>>, vector<96x1xf32>
    %41 = vector.broadcast %40 : vector<96x1xf32> to vector<96x128xf32>
    %42 = arith.addf %39, %41 : vector<96x128xf32>
    %43 = vector.extract_strided_slice %42 {offsets = [0, 0], sizes = [32, 128], strides = [1, 1]} : vector<96x128xf32> to vector<32x128xf32>
    %44 = vector.extract_strided_slice %42 {offsets = [32, 0], sizes = [32, 128], strides = [1, 1]} : vector<96x128xf32> to vector<32x128xf32>
    %45 = vector.extract_strided_slice %42 {offsets = [64, 0], sizes = [32, 128], strides = [1, 1]} : vector<96x128xf32> to vector<32x128xf32>
    %c1_34 = arith.constant 1 : index
    %c0_35 = arith.constant 0 : index
    %c0_36 = arith.constant 0 : index
    %46 = vector.load %arg1[%c1_34, %c0_35, %c0_36] : memref<2x64x128xf32, #tpu.memory_space<vmem>>, vector<1x64x128xf32>
    %47 = vector.shape_cast %46 : vector<1x64x128xf32> to vector<64x128xf32>
    %48 = arith.truncf %47 : vector<64x128xf32> to vector<64x128xbf16>
    %c1_37 = arith.constant 1 : index
    %c0_38 = arith.constant 0 : index
    %c0_39 = arith.constant 0 : index
    %49 = vector.load %arg2[%c1_37, %c0_38, %c0_39] : memref<2x64x128xf32, #tpu.memory_space<vmem>>, vector<1x64x128xf32>
    %50 = vector.shape_cast %49 : vector<1x64x128xf32> to vector<64x128xf32>
    %51 = arith.truncf %50 : vector<64x128xf32> to vector<64x128xbf16>
    %c1_40 = arith.constant 1 : index
    %c0_41 = arith.constant 0 : index
    %c0_42 = arith.constant 0 : index
    %52 = vector.load %arg3[%c1_40, %c0_41, %c0_42] : memref<2x64x128xf32, #tpu.memory_space<vmem>>, vector<1x64x128xf32>
    %53 = vector.shape_cast %52 : vector<1x64x128xf32> to vector<64x128xf32>
    %54 = arith.truncf %53 : vector<64x128xf32> to vector<64x128xbf16>
    %cst_43 = arith.constant dense<0.000000e+00> : vector<32x128xf32>
    %55 = tpu.matmul %1, %48, %cst_43 {dimension_numbers = #tpu.dot_dimension_numbers<[1], [0], [0], [1], [0, 0, 1, 1], [], []>} : vector<32x64xbf16>, vector<64x128xbf16>, vector<32x128xf32> -> vector<32x128xf32>
    %c0_44 = arith.constant 0 : index
    %c0_45 = arith.constant 0 : index
    %c0_46 = arith.constant 0 : index
    %56 = vector.load %arg5[%c0_44, %c0_45, %c0_46] : memref<3x32x1xf32, #tpu.memory_space<vmem>>, vector<1x32x1xf32>
    %57 = vector.shape_cast %56 : vector<1x32x1xf32> to vector<32x1xf32>
    %58 = vector.broadcast %57 : vector<32x1xf32> to vector<32x128xf32>
    %59 = arith.addf %55, %58 : vector<32x128xf32>
    %cst_47 = arith.constant 0.000000e+00 : f32
    %60 = vector.broadcast %cst_47 : f32 to vector<32x128xf32>
    %61 = arith.maximumf %59, %60 : vector<32x128xf32>
    %cst_48 = arith.constant dense<0.000000e+00> : vector<32x128xf32>
    %62 = tpu.matmul %3, %54, %cst_48 {dimension_numbers = #tpu.dot_dimension_numbers<[1], [0], [0], [1], [0, 0, 1, 1], [], []>} : vector<32x64xbf16>, vector<64x128xbf16>, vector<32x128xf32> -> vector<32x128xf32>
    %c1_49 = arith.constant 1 : index
    %c0_50 = arith.constant 0 : index
    %c0_51 = arith.constant 0 : index
    %63 = vector.load %arg5[%c1_49, %c0_50, %c0_51] : memref<3x32x1xf32, #tpu.memory_space<vmem>>, vector<1x32x1xf32>
    %64 = vector.shape_cast %63 : vector<1x32x1xf32> to vector<32x1xf32>
    %65 = vector.broadcast %64 : vector<32x1xf32> to vector<32x128xf32>
    %66 = arith.addf %62, %65 : vector<32x128xf32>
    %cst_52 = arith.constant 0.000000e+00 : f32
    %67 = vector.broadcast %cst_52 : f32 to vector<32x128xf32>
    %68 = arith.maximumf %66, %67 : vector<32x128xf32>
    %cst_53 = arith.constant dense<0.000000e+00> : vector<32x128xf32>
    %69 = tpu.matmul %5, %51, %cst_53 {dimension_numbers = #tpu.dot_dimension_numbers<[1], [0], [0], [1], [0, 0, 1, 1], [], []>} : vector<32x64xbf16>, vector<64x128xbf16>, vector<32x128xf32> -> vector<32x128xf32>
    %c2_54 = arith.constant 2 : index
    %c0_55 = arith.constant 0 : index
    %c0_56 = arith.constant 0 : index
    %70 = vector.load %arg5[%c2_54, %c0_55, %c0_56] : memref<3x32x1xf32, #tpu.memory_space<vmem>>, vector<1x32x1xf32>
    %71 = vector.shape_cast %70 : vector<1x32x1xf32> to vector<32x1xf32>
    %72 = vector.broadcast %71 : vector<32x1xf32> to vector<32x128xf32>
    %73 = arith.addf %69, %72 : vector<32x128xf32>
    %cst_57 = arith.constant 0.000000e+00 : f32
    %74 = vector.broadcast %cst_57 : f32 to vector<32x128xf32>
    %75 = arith.maximumf %73, %74 : vector<32x128xf32>
    %76 = arith.mulf %75, %68 : vector<32x128xf32>
    %c0_58 = arith.constant 0 : index
    %c0_59 = arith.constant 0 : index
    %77 = vector.load %arg6[%c0_58, %c0_59] : memref<96x32xbf16, #tpu.memory_space<vmem>>, vector<96x32xbf16>
    %78 = arith.truncf %61 : vector<32x128xf32> to vector<32x128xbf16>
    %cst_60 = arith.constant dense<0.000000e+00> : vector<96x128xf32>
    %79 = tpu.matmul %77, %78, %cst_60 {dimension_numbers = #tpu.dot_dimension_numbers<[1], [0], [0], [1], [0, 0, 1, 1], [], []>} : vector<96x32xbf16>, vector<32x128xbf16>, vector<96x128xf32> -> vector<96x128xf32>
    %c0_61 = arith.constant 0 : index
    %c0_62 = arith.constant 0 : index
    %80 = vector.load %arg7[%c0_61, %c0_62] : memref<96x1xf32, #tpu.memory_space<vmem>>, vector<96x1xf32>
    %81 = vector.broadcast %80 : vector<96x1xf32> to vector<96x128xf32>
    %82 = arith.addf %79, %81 : vector<96x128xf32>
    %83 = vector.extract_strided_slice %82 {offsets = [0, 0], sizes = [32, 128], strides = [1, 1]} : vector<96x128xf32> to vector<32x128xf32>
    %84 = vector.extract_strided_slice %82 {offsets = [32, 0], sizes = [32, 128], strides = [1, 1]} : vector<96x128xf32> to vector<32x128xf32>
    %85 = vector.extract_strided_slice %82 {offsets = [64, 0], sizes = [32, 128], strides = [1, 1]} : vector<96x128xf32> to vector<32x128xf32>
    %86 = vector.extract_strided_slice %43 {offsets = [0, 0], sizes = [8, 128], strides = [1, 1]} : vector<32x128xf32> to vector<8x128xf32>
    %87 = vector.extract_strided_slice %44 {offsets = [0, 0], sizes = [8, 128], strides = [1, 1]} : vector<32x128xf32> to vector<8x128xf32>
    %88 = arith.mulf %86, %87 : vector<8x128xf32>
    %cst_63 = arith.constant dense<0.000000e+00> : vector<128xf32>
    %89 = vector.multi_reduction <add>, %88, %cst_63 [0] : vector<8x128xf32> to vector<128xf32>
    %90 = vector.shape_cast %89 : vector<128xf32> to vector<1x128xf32>
    %91 = vector.extract_strided_slice %43 {offsets = [8, 0], sizes = [8, 128], strides = [1, 1]} : vector<32x128xf32> to vector<8x128xf32>
    %92 = vector.extract_strided_slice %44 {offsets = [8, 0], sizes = [8, 128], strides = [1, 1]} : vector<32x128xf32> to vector<8x128xf32>
    %93 = arith.mulf %91, %92 : vector<8x128xf32>
    %cst_64 = arith.constant dense<0.000000e+00> : vector<128xf32>
    %94 = vector.multi_reduction <add>, %93, %cst_64 [0] : vector<8x128xf32> to vector<128xf32>
    %95 = vector.shape_cast %94 : vector<128xf32> to vector<1x128xf32>
    %96 = vector.extract_strided_slice %43 {offsets = [16, 0], sizes = [8, 128], strides = [1, 1]} : vector<32x128xf32> to vector<8x128xf32>
    %97 = vector.extract_strided_slice %44 {offsets = [16, 0], sizes = [8, 128], strides = [1, 1]} : vector<32x128xf32> to vector<8x128xf32>
    %98 = arith.mulf %96, %97 : vector<8x128xf32>
    %cst_65 = arith.constant dense<0.000000e+00> : vector<128xf32>
    %99 = vector.multi_reduction <add>, %98, %cst_65 [0] : vector<8x128xf32> to vector<128xf32>
    %100 = vector.shape_cast %99 : vector<128xf32> to vector<1x128xf32>
    %101 = vector.extract_strided_slice %43 {offsets = [24, 0], sizes = [8, 128], strides = [1, 1]} : vector<32x128xf32> to vector<8x128xf32>
    %102 = vector.extract_strided_slice %44 {offsets = [24, 0], sizes = [8, 128], strides = [1, 1]} : vector<32x128xf32> to vector<8x128xf32>
    %103 = arith.mulf %101, %102 : vector<8x128xf32>
    %cst_66 = arith.constant dense<0.000000e+00> : vector<128xf32>
    %104 = vector.multi_reduction <add>, %103, %cst_66 [0] : vector<8x128xf32> to vector<128xf32>
    %105 = vector.shape_cast %104 : vector<128xf32> to vector<1x128xf32>
    %106 = vector.extract_strided_slice %43 {offsets = [0, 0], sizes = [8, 128], strides = [1, 1]} : vector<32x128xf32> to vector<8x128xf32>
    %107 = vector.extract_strided_slice %84 {offsets = [0, 0], sizes = [8, 128], strides = [1, 1]} : vector<32x128xf32> to vector<8x128xf32>
    %108 = arith.mulf %106, %107 : vector<8x128xf32>
    %cst_67 = arith.constant dense<0.000000e+00> : vector<128xf32>
    %109 = vector.multi_reduction <add>, %108, %cst_67 [0] : vector<8x128xf32> to vector<128xf32>
    %110 = vector.shape_cast %109 : vector<128xf32> to vector<1x128xf32>
    %111 = vector.extract_strided_slice %43 {offsets = [8, 0], sizes = [8, 128], strides = [1, 1]} : vector<32x128xf32> to vector<8x128xf32>
    %112 = vector.extract_strided_slice %84 {offsets = [8, 0], sizes = [8, 128], strides = [1, 1]} : vector<32x128xf32> to vector<8x128xf32>
    %113 = arith.mulf %111, %112 : vector<8x128xf32>
    %cst_68 = arith.constant dense<0.000000e+00> : vector<128xf32>
    %114 = vector.multi_reduction <add>, %113, %cst_68 [0] : vector<8x128xf32> to vector<128xf32>
    %115 = vector.shape_cast %114 : vector<128xf32> to vector<1x128xf32>
    %116 = vector.extract_strided_slice %43 {offsets = [16, 0], sizes = [8, 128], strides = [1, 1]} : vector<32x128xf32> to vector<8x128xf32>
    %117 = vector.extract_strided_slice %84 {offsets = [16, 0], sizes = [8, 128], strides = [1, 1]} : vector<32x128xf32> to vector<8x128xf32>
    %118 = arith.mulf %116, %117 : vector<8x128xf32>
    %cst_69 = arith.constant dense<0.000000e+00> : vector<128xf32>
    %119 = vector.multi_reduction <add>, %118, %cst_69 [0] : vector<8x128xf32> to vector<128xf32>
    %120 = vector.shape_cast %119 : vector<128xf32> to vector<1x128xf32>
    %121 = vector.extract_strided_slice %43 {offsets = [24, 0], sizes = [8, 128], strides = [1, 1]} : vector<32x128xf32> to vector<8x128xf32>
    %122 = vector.extract_strided_slice %84 {offsets = [24, 0], sizes = [8, 128], strides = [1, 1]} : vector<32x128xf32> to vector<8x128xf32>
    %123 = arith.mulf %121, %122 : vector<8x128xf32>
    %cst_70 = arith.constant dense<0.000000e+00> : vector<128xf32>
    %124 = vector.multi_reduction <add>, %123, %cst_70 [0] : vector<8x128xf32> to vector<128xf32>
    %125 = vector.shape_cast %124 : vector<128xf32> to vector<1x128xf32>
    %126 = arith.maximumf %90, %110 : vector<1x128xf32>
    %127 = arith.subf %90, %126 : vector<1x128xf32>
    %128 = math.exp %127 : vector<1x128xf32>
    %129 = arith.subf %110, %126 : vector<1x128xf32>
    %130 = math.exp %129 : vector<1x128xf32>
    %131 = arith.addf %128, %130 : vector<1x128xf32>
    %132 = tpu.reciprocal %131 {approx = true} : vector<1x128xf32> -> vector<1x128xf32>
    %133 = arith.mulf %128, %132 : vector<1x128xf32>
    %134 = vector.extract_strided_slice %45 {offsets = [0, 0], sizes = [8, 128], strides = [1, 1]} : vector<32x128xf32> to vector<8x128xf32>
    %135 = vector.broadcast %133 : vector<1x128xf32> to vector<8x128xf32>
    %136 = arith.mulf %135, %134 : vector<8x128xf32>
    %137 = arith.mulf %130, %132 : vector<1x128xf32>
    %138 = vector.extract_strided_slice %85 {offsets = [0, 0], sizes = [8, 128], strides = [1, 1]} : vector<32x128xf32> to vector<8x128xf32>
    %139 = vector.broadcast %137 : vector<1x128xf32> to vector<8x128xf32>
    %140 = arith.mulf %139, %138 : vector<8x128xf32>
    %141 = arith.addf %136, %140 : vector<8x128xf32>
    %142 = arith.maximumf %95, %115 : vector<1x128xf32>
    %143 = arith.subf %95, %142 : vector<1x128xf32>
    %144 = math.exp %143 : vector<1x128xf32>
    %145 = arith.subf %115, %142 : vector<1x128xf32>
    %146 = math.exp %145 : vector<1x128xf32>
    %147 = arith.addf %144, %146 : vector<1x128xf32>
    %148 = tpu.reciprocal %147 {approx = true} : vector<1x128xf32> -> vector<1x128xf32>
    %149 = arith.mulf %144, %148 : vector<1x128xf32>
    %150 = vector.extract_strided_slice %45 {offsets = [8, 0], sizes = [8, 128], strides = [1, 1]} : vector<32x128xf32> to vector<8x128xf32>
    %151 = vector.broadcast %149 : vector<1x128xf32> to vector<8x128xf32>
    %152 = arith.mulf %151, %150 : vector<8x128xf32>
    %153 = arith.mulf %146, %148 : vector<1x128xf32>
    %154 = vector.extract_strided_slice %85 {offsets = [8, 0], sizes = [8, 128], strides = [1, 1]} : vector<32x128xf32> to vector<8x128xf32>
    %155 = vector.broadcast %153 : vector<1x128xf32> to vector<8x128xf32>
    %156 = arith.mulf %155, %154 : vector<8x128xf32>
    %157 = arith.addf %152, %156 : vector<8x128xf32>
    %158 = arith.maximumf %100, %120 : vector<1x128xf32>
    %159 = arith.subf %100, %158 : vector<1x128xf32>
    %160 = math.exp %159 : vector<1x128xf32>
    %161 = arith.subf %120, %158 : vector<1x128xf32>
    %162 = math.exp %161 : vector<1x128xf32>
    %163 = arith.addf %160, %162 : vector<1x128xf32>
    %164 = tpu.reciprocal %163 {approx = true} : vector<1x128xf32> -> vector<1x128xf32>
    %165 = arith.mulf %160, %164 : vector<1x128xf32>
    %166 = vector.extract_strided_slice %45 {offsets = [16, 0], sizes = [8, 128], strides = [1, 1]} : vector<32x128xf32> to vector<8x128xf32>
    %167 = vector.broadcast %165 : vector<1x128xf32> to vector<8x128xf32>
    %168 = arith.mulf %167, %166 : vector<8x128xf32>
    %169 = arith.mulf %162, %164 : vector<1x128xf32>
    %170 = vector.extract_strided_slice %85 {offsets = [16, 0], sizes = [8, 128], strides = [1, 1]} : vector<32x128xf32> to vector<8x128xf32>
    %171 = vector.broadcast %169 : vector<1x128xf32> to vector<8x128xf32>
    %172 = arith.mulf %171, %170 : vector<8x128xf32>
    %173 = arith.addf %168, %172 : vector<8x128xf32>
    %174 = arith.maximumf %105, %125 : vector<1x128xf32>
    %175 = arith.subf %105, %174 : vector<1x128xf32>
    %176 = math.exp %175 : vector<1x128xf32>
    %177 = arith.subf %125, %174 : vector<1x128xf32>
    %178 = math.exp %177 : vector<1x128xf32>
    %179 = arith.addf %176, %178 : vector<1x128xf32>
    %180 = tpu.reciprocal %179 {approx = true} : vector<1x128xf32> -> vector<1x128xf32>
    %181 = arith.mulf %176, %180 : vector<1x128xf32>
    %182 = vector.extract_strided_slice %45 {offsets = [24, 0], sizes = [8, 128], strides = [1, 1]} : vector<32x128xf32> to vector<8x128xf32>
    %183 = vector.broadcast %181 : vector<1x128xf32> to vector<8x128xf32>
    %184 = arith.mulf %183, %182 : vector<8x128xf32>
    %185 = arith.mulf %178, %180 : vector<1x128xf32>
    %186 = vector.extract_strided_slice %85 {offsets = [24, 0], sizes = [8, 128], strides = [1, 1]} : vector<32x128xf32> to vector<8x128xf32>
    %187 = vector.broadcast %185 : vector<1x128xf32> to vector<8x128xf32>
    %188 = arith.mulf %187, %186 : vector<8x128xf32>
    %189 = arith.addf %184, %188 : vector<8x128xf32>
    %190 = tpu.concatenate %141, %157, %173, %189 in 0 : vector<8x128xf32>, vector<8x128xf32>, vector<8x128xf32>, vector<8x128xf32> -> vector<32x128xf32>
    %c0_71 = arith.constant 0 : index
    %c0_72 = arith.constant 0 : index
    %191 = vector.load %arg8[%c0_71, %c0_72] : memref<32x32xbf16, #tpu.memory_space<vmem>>, vector<32x32xbf16>
    %192 = arith.truncf %190 : vector<32x128xf32> to vector<32x128xbf16>
    %cst_73 = arith.constant dense<0.000000e+00> : vector<32x128xf32>
    %193 = tpu.matmul %191, %192, %cst_73 {dimension_numbers = #tpu.dot_dimension_numbers<[1], [0], [0], [1], [0, 0, 1, 1], [], []>} : vector<32x32xbf16>, vector<32x128xbf16>, vector<32x128xf32> -> vector<32x128xf32>
    %c0_74 = arith.constant 0 : index
    %c0_75 = arith.constant 0 : index
    %194 = vector.load %arg9[%c0_74, %c0_75] : memref<32x1xf32, #tpu.memory_space<vmem>>, vector<32x1xf32>
    %195 = vector.broadcast %194 : vector<32x1xf32> to vector<32x128xf32>
    %196 = arith.addf %193, %195 : vector<32x128xf32>
    %197 = arith.addf %196, %36 : vector<32x128xf32>
    %c0_76 = arith.constant 0 : index
    %c0_77 = arith.constant 0 : index
    %c0_78 = arith.constant 0 : index
    %198 = vector.load %arg10[%c0_76, %c0_77, %c0_78] : memref<2x32x128xf32, #tpu.memory_space<vmem>>, vector<1x32x128xf32>
    %199 = vector.shape_cast %198 : vector<1x32x128xf32> to vector<32x128xf32>
    %200 = vector.shape_cast %197 : vector<32x128xf32> to vector<1x32x128xf32>
    tpu.vector_store %arg10[%c0_76, %c0_77, %c0_78], %200 {strides = array<i32>} : memref<2x32x128xf32, #tpu.memory_space<vmem>>, vector<1x32x128xf32>,
    %201 = vector.extract_strided_slice %83 {offsets = [0, 0], sizes = [8, 128], strides = [1, 1]} : vector<32x128xf32> to vector<8x128xf32>
    %202 = vector.extract_strided_slice %44 {offsets = [0, 0], sizes = [8, 128], strides = [1, 1]} : vector<32x128xf32> to vector<8x128xf32>
    %203 = arith.mulf %201, %202 : vector<8x128xf32>
    %cst_79 = arith.constant dense<0.000000e+00> : vector<128xf32>
    %204 = vector.multi_reduction <add>, %203, %cst_79 [0] : vector<8x128xf32> to vector<128xf32>
    %205 = vector.shape_cast %204 : vector<128xf32> to vector<1x128xf32>
    %206 = vector.extract_strided_slice %83 {offsets = [8, 0], sizes = [8, 128], strides = [1, 1]} : vector<32x128xf32> to vector<8x128xf32>
    %207 = vector.extract_strided_slice %44 {offsets = [8, 0], sizes = [8, 128], strides = [1, 1]} : vector<32x128xf32> to vector<8x128xf32>
    %208 = arith.mulf %206, %207 : vector<8x128xf32>
    %cst_80 = arith.constant dense<0.000000e+00> : vector<128xf32>
    %209 = vector.multi_reduction <add>, %208, %cst_80 [0] : vector<8x128xf32> to vector<128xf32>
    %210 = vector.shape_cast %209 : vector<128xf32> to vector<1x128xf32>
    %211 = vector.extract_strided_slice %83 {offsets = [16, 0], sizes = [8, 128], strides = [1, 1]} : vector<32x128xf32> to vector<8x128xf32>
    %212 = vector.extract_strided_slice %44 {offsets = [16, 0], sizes = [8, 128], strides = [1, 1]} : vector<32x128xf32> to vector<8x128xf32>
    %213 = arith.mulf %211, %212 : vector<8x128xf32>
    %cst_81 = arith.constant dense<0.000000e+00> : vector<128xf32>
    %214 = vector.multi_reduction <add>, %213, %cst_81 [0] : vector<8x128xf32> to vector<128xf32>
    %215 = vector.shape_cast %214 : vector<128xf32> to vector<1x128xf32>
    %216 = vector.extract_strided_slice %83 {offsets = [24, 0], sizes = [8, 128], strides = [1, 1]} : vector<32x128xf32> to vector<8x128xf32>
    %217 = vector.extract_strided_slice %44 {offsets = [24, 0], sizes = [8, 128], strides = [1, 1]} : vector<32x128xf32> to vector<8x128xf32>
    %218 = arith.mulf %216, %217 : vector<8x128xf32>
    %cst_82 = arith.constant dense<0.000000e+00> : vector<128xf32>
    %219 = vector.multi_reduction <add>, %218, %cst_82 [0] : vector<8x128xf32> to vector<128xf32>
    %220 = vector.shape_cast %219 : vector<128xf32> to vector<1x128xf32>
    %221 = vector.extract_strided_slice %83 {offsets = [0, 0], sizes = [8, 128], strides = [1, 1]} : vector<32x128xf32> to vector<8x128xf32>
    %222 = vector.extract_strided_slice %84 {offsets = [0, 0], sizes = [8, 128], strides = [1, 1]} : vector<32x128xf32> to vector<8x128xf32>
    %223 = arith.mulf %221, %222 : vector<8x128xf32>
    %cst_83 = arith.constant dense<0.000000e+00> : vector<128xf32>
    %224 = vector.multi_reduction <add>, %223, %cst_83 [0] : vector<8x128xf32> to vector<128xf32>
    %225 = vector.shape_cast %224 : vector<128xf32> to vector<1x128xf32>
    %226 = vector.extract_strided_slice %83 {offsets = [8, 0], sizes = [8, 128], strides = [1, 1]} : vector<32x128xf32> to vector<8x128xf32>
    %227 = vector.extract_strided_slice %84 {offsets = [8, 0], sizes = [8, 128], strides = [1, 1]} : vector<32x128xf32> to vector<8x128xf32>
    %228 = arith.mulf %226, %227 : vector<8x128xf32>
    %cst_84 = arith.constant dense<0.000000e+00> : vector<128xf32>
    %229 = vector.multi_reduction <add>, %228, %cst_84 [0] : vector<8x128xf32> to vector<128xf32>
    %230 = vector.shape_cast %229 : vector<128xf32> to vector<1x128xf32>
    %231 = vector.extract_strided_slice %83 {offsets = [16, 0], sizes = [8, 128], strides = [1, 1]} : vector<32x128xf32> to vector<8x128xf32>
    %232 = vector.extract_strided_slice %84 {offsets = [16, 0], sizes = [8, 128], strides = [1, 1]} : vector<32x128xf32> to vector<8x128xf32>
    %233 = arith.mulf %231, %232 : vector<8x128xf32>
    %cst_85 = arith.constant dense<0.000000e+00> : vector<128xf32>
    %234 = vector.multi_reduction <add>, %233, %cst_85 [0] : vector<8x128xf32> to vector<128xf32>
    %235 = vector.shape_cast %234 : vector<128xf32> to vector<1x128xf32>
    %236 = vector.extract_strided_slice %83 {offsets = [24, 0], sizes = [8, 128], strides = [1, 1]} : vector<32x128xf32> to vector<8x128xf32>
    %237 = vector.extract_strided_slice %84 {offsets = [24, 0], sizes = [8, 128], strides = [1, 1]} : vector<32x128xf32> to vector<8x128xf32>
    %238 = arith.mulf %236, %237 : vector<8x128xf32>
    %cst_86 = arith.constant dense<0.000000e+00> : vector<128xf32>
    %239 = vector.multi_reduction <add>, %238, %cst_86 [0] : vector<8x128xf32> to vector<128xf32>
    %240 = vector.shape_cast %239 : vector<128xf32> to vector<1x128xf32>
    %241 = arith.maximumf %205, %225 : vector<1x128xf32>
    %242 = arith.subf %205, %241 : vector<1x128xf32>
    %243 = math.exp %242 : vector<1x128xf32>
    %244 = arith.subf %225, %241 : vector<1x128xf32>
    %245 = math.exp %244 : vector<1x128xf32>
    %246 = arith.addf %243, %245 : vector<1x128xf32>
    %247 = tpu.reciprocal %246 {approx = true} : vector<1x128xf32> -> vector<1x128xf32>
    %248 = arith.mulf %243, %247 : vector<1x128xf32>
    %249 = vector.extract_strided_slice %45 {offsets = [0, 0], sizes = [8, 128], strides = [1, 1]} : vector<32x128xf32> to vector<8x128xf32>
    %250 = vector.broadcast %248 : vector<1x128xf32> to vector<8x128xf32>
    %251 = arith.mulf %250, %249 : vector<8x128xf32>
    %252 = arith.mulf %245, %247 : vector<1x128xf32>
    %253 = vector.extract_strided_slice %85 {offsets = [0, 0], sizes = [8, 128], strides = [1, 1]} : vector<32x128xf32> to vector<8x128xf32>
    %254 = vector.broadcast %252 : vector<1x128xf32> to vector<8x128xf32>
    %255 = arith.mulf %254, %253 : vector<8x128xf32>
    %256 = arith.addf %251, %255 : vector<8x128xf32>
    %257 = arith.maximumf %210, %230 : vector<1x128xf32>
    %258 = arith.subf %210, %257 : vector<1x128xf32>
    %259 = math.exp %258 : vector<1x128xf32>
    %260 = arith.subf %230, %257 : vector<1x128xf32>
    %261 = math.exp %260 : vector<1x128xf32>
    %262 = arith.addf %259, %261 : vector<1x128xf32>
    %263 = tpu.reciprocal %262 {approx = true} : vector<1x128xf32> -> vector<1x128xf32>
    %264 = arith.mulf %259, %263 : vector<1x128xf32>
    %265 = vector.extract_strided_slice %45 {offsets = [8, 0], sizes = [8, 128], strides = [1, 1]} : vector<32x128xf32> to vector<8x128xf32>
    %266 = vector.broadcast %264 : vector<1x128xf32> to vector<8x128xf32>
    %267 = arith.mulf %266, %265 : vector<8x128xf32>
    %268 = arith.mulf %261, %263 : vector<1x128xf32>
    %269 = vector.extract_strided_slice %85 {offsets = [8, 0], sizes = [8, 128], strides = [1, 1]} : vector<32x128xf32> to vector<8x128xf32>
    %270 = vector.broadcast %268 : vector<1x128xf32> to vector<8x128xf32>
    %271 = arith.mulf %270, %269 : vector<8x128xf32>
    %272 = arith.addf %267, %271 : vector<8x128xf32>
    %273 = arith.maximumf %215, %235 : vector<1x128xf32>
    %274 = arith.subf %215, %273 : vector<1x128xf32>
    %275 = math.exp %274 : vector<1x128xf32>
    %276 = arith.subf %235, %273 : vector<1x128xf32>
    %277 = math.exp %276 : vector<1x128xf32>
    %278 = arith.addf %275, %277 : vector<1x128xf32>
    %279 = tpu.reciprocal %278 {approx = true} : vector<1x128xf32> -> vector<1x128xf32>
    %280 = arith.mulf %275, %279 : vector<1x128xf32>
    %281 = vector.extract_strided_slice %45 {offsets = [16, 0], sizes = [8, 128], strides = [1, 1]} : vector<32x128xf32> to vector<8x128xf32>
    %282 = vector.broadcast %280 : vector<1x128xf32> to vector<8x128xf32>
    %283 = arith.mulf %282, %281 : vector<8x128xf32>
    %284 = arith.mulf %277, %279 : vector<1x128xf32>
    %285 = vector.extract_strided_slice %85 {offsets = [16, 0], sizes = [8, 128], strides = [1, 1]} : vector<32x128xf32> to vector<8x128xf32>
    %286 = vector.broadcast %284 : vector<1x128xf32> to vector<8x128xf32>
    %287 = arith.mulf %286, %285 : vector<8x128xf32>
    %288 = arith.addf %283, %287 : vector<8x128xf32>
    %289 = arith.maximumf %220, %240 : vector<1x128xf32>
    %290 = arith.subf %220, %289 : vector<1x128xf32>
    %291 = math.exp %290 : vector<1x128xf32>
    %292 = arith.subf %240, %289 : vector<1x128xf32>
    %293 = math.exp %292 : vector<1x128xf32>
    %294 = arith.addf %291, %293 : vector<1x128xf32>
    %295 = tpu.reciprocal %294 {approx = true} : vector<1x128xf32> -> vector<1x128xf32>
    %296 = arith.mulf %291, %295 : vector<1x128xf32>
    %297 = vector.extract_strided_slice %45 {offsets = [24, 0], sizes = [8, 128], strides = [1, 1]} : vector<32x128xf32> to vector<8x128xf32>
    %298 = vector.broadcast %296 : vector<1x128xf32> to vector<8x128xf32>
    %299 = arith.mulf %298, %297 : vector<8x128xf32>
    %300 = arith.mulf %293, %295 : vector<1x128xf32>
    %301 = vector.extract_strided_slice %85 {offsets = [24, 0], sizes = [8, 128], strides = [1, 1]} : vector<32x128xf32> to vector<8x128xf32>
    %302 = vector.broadcast %300 : vector<1x128xf32> to vector<8x128xf32>
    %303 = arith.mulf %302, %301 : vector<8x128xf32>
    %304 = arith.addf %299, %303 : vector<8x128xf32>
    %305 = tpu.concatenate %256, %272, %288, %304 in 0 : vector<8x128xf32>, vector<8x128xf32>, vector<8x128xf32>, vector<8x128xf32> -> vector<32x128xf32>
    %c0_87 = arith.constant 0 : index
    %c0_88 = arith.constant 0 : index
    %306 = vector.load %arg8[%c0_87, %c0_88] : memref<32x32xbf16, #tpu.memory_space<vmem>>, vector<32x32xbf16>
    %307 = arith.truncf %305 : vector<32x128xf32> to vector<32x128xbf16>
    %cst_89 = arith.constant dense<0.000000e+00> : vector<32x128xf32>
    %308 = tpu.matmul %306, %307, %cst_89 {dimension_numbers = #tpu.dot_dimension_numbers<[1], [0], [0], [1], [0, 0, 1, 1], [], []>} : vector<32x32xbf16>, vector<32x128xbf16>, vector<32x128xf32> -> vector<32x128xf32>
    %c0_90 = arith.constant 0 : index
    %c0_91 = arith.constant 0 : index
    %309 = vector.load %arg9[%c0_90, %c0_91] : memref<32x1xf32, #tpu.memory_space<vmem>>, vector<32x1xf32>
    %310 = vector.broadcast %309 : vector<32x1xf32> to vector<32x128xf32>
    %311 = arith.addf %308, %310 : vector<32x128xf32>
    %312 = arith.addf %311, %76 : vector<32x128xf32>
    %c1_92 = arith.constant 1 : index
    %c0_93 = arith.constant 0 : index
    %c0_94 = arith.constant 0 : index
    %313 = vector.load %arg10[%c1_92, %c0_93, %c0_94] : memref<2x32x128xf32, #tpu.memory_space<vmem>>, vector<1x32x128xf32>
    %314 = vector.shape_cast %313 : vector<1x32x128xf32> to vector<32x128xf32>
    %315 = vector.shape_cast %312 : vector<32x128xf32> to vector<1x32x128xf32>
    tpu.vector_store %arg10[%c1_92, %c0_93, %c0_94], %315 {strides = array<i32>} : memref<2x32x128xf32, #tpu.memory_space<vmem>>, vector<1x32x128xf32>,
    return
  }
  func.func @transform_0(%arg0: i32) -> (i32, i32, i32) {
    %c0_i32 = arith.constant 0 : i32
    %0 = arith.addi %arg0, %c0_i32 : i32
    %c0_i32_0 = arith.constant 0 : i32
    %c0_i32_1 = arith.constant 0 : i32
    %c0_i32_2 = arith.constant 0 : i32
    return %c0_i32_0, %c0_i32_1, %0 : i32, i32, i32
  }
  func.func @transform_1(%arg0: i32) -> (i32, i32, i32) {
    %c2_i32 = arith.constant 2 : i32
    %0 = arith.addi %arg0, %c2_i32 : i32
    %c0_i32 = arith.constant 0 : i32
    %c0_i32_0 = arith.constant 0 : i32
    %c0_i32_1 = arith.constant 0 : i32
    return %c0_i32, %c0_i32_0, %0 : i32, i32, i32
  }
  func.func @transform_2(%arg0: i32) -> (i32, i32, i32) {
    %c0_i32 = arith.constant 0 : i32
    %0 = arith.addi %arg0, %c0_i32 : i32
    %c0_i32_0 = arith.constant 0 : i32
    %c0_i32_1 = arith.constant 0 : i32
    %c0_i32_2 = arith.constant 0 : i32
    return %c0_i32_0, %c0_i32_1, %0 : i32, i32, i32
  }
  func.func @transform_3(%arg0: i32) -> (i32, i32, i32) {
    %c0_i32 = arith.constant 0 : i32
    %c0_i32_0 = arith.constant 0 : i32
    %c0_i32_1 = arith.constant 0 : i32
    %c0_i32_2 = arith.constant 0 : i32
    return %c0_i32, %c0_i32_0, %c0_i32_1 : i32, i32, i32
  }
  func.func @transform_4(%arg0: i32) -> (i32, i32, i32) {
    %c0_i32 = arith.constant 0 : i32
    %c0_i32_0 = arith.constant 0 : i32
    %c0_i32_1 = arith.constant 0 : i32
    %c0_i32_2 = arith.constant 0 : i32
    return %c0_i32, %c0_i32_0, %c0_i32_1 : i32, i32, i32
  }
  func.func @transform_5(%arg0: i32) -> (i32, i32) {
    %c0_i32 = arith.constant 0 : i32
    %c0_i32_0 = arith.constant 0 : i32
    %c0_i32_1 = arith.constant 0 : i32
    return %c0_i32, %c0_i32_0 : i32, i32
  }
  func.func @transform_6(%arg0: i32) -> (i32, i32) {
    %c0_i32 = arith.constant 0 : i32
    %c0_i32_0 = arith.constant 0 : i32
    %c0_i32_1 = arith.constant 0 : i32
    return %c0_i32, %c0_i32_0 : i32, i32
  }
  func.func @transform_7(%arg0: i32) -> (i32, i32) {
    %c0_i32 = arith.constant 0 : i32
    %c0_i32_0 = arith.constant 0 : i32
    %c0_i32_1 = arith.constant 0 : i32
    return %c0_i32, %c0_i32_0 : i32, i32
  }
  func.func @transform_8(%arg0: i32) -> (i32, i32) {
    %c0_i32 = arith.constant 0 : i32
    %c0_i32_0 = arith.constant 0 : i32
    %c0_i32_1 = arith.constant 0 : i32
    return %c0_i32, %c0_i32_0 : i32, i32
  }
  func.func @transform_9(%arg0: i32) -> (i32, i32, i32) {
    %c0_i32 = arith.constant 0 : i32
    %c0_i32_0 = arith.constant 0 : i32
    %c0_i32_1 = arith.constant 0 : i32
    return %c0_i32, %c0_i32_0, %arg0 : i32, i32, i32
  }
}

</mosaic_0001>

<llo_original>
// kernel: tpu_custom_call.1
$region0: #{tpu_custom_call.1}
  #allocation0 [shape = 'u32[]', space=smem, size = 0x4, offset = 0x4, fixed_abs, tag = 'smem constant byte address 0x4 - core index']
  #allocation1 [shape = 'u32[144,128]{1,0:T(1,128)}', space=vmem, size = 0x12000, scoped, tag = 'internal scratch']
  %s0 = inlined_call_operand.hbm [shape: f32[2,64,512], index: 0, kind: input, shape index: {}]
  %s1 = inlined_call_operand.hbm [shape: f32[2,64,512], index: 1, kind: input, shape index: {}]
  %s2 = inlined_call_operand.vmem [shape: f32[2,64,256], index: 2, kind: input, shape index: {}]
  %s3 = inlined_call_operand.vmem [shape: bf16[3,32,64], index: 3, kind: input, shape index: {}]
  %s4 = inlined_call_operand.vmem [shape: f32[3,32,1], index: 4, kind: input, shape index: {}]
  %s5 = inlined_call_operand.vmem [shape: bf16[96,32], index: 5, kind: input, shape index: {}]
  %s6 = inlined_call_operand.vmem [shape: f32[96,1], index: 6, kind: input, shape index: {}]
  %s7 = inlined_call_operand.hbm [shape: bf16[32,32], index: 7, kind: input, shape index: {}]
  %s8 = inlined_call_operand.vmem [shape: f32[32,1], index: 8, kind: input, shape index: {}]
  %s9 = inlined_call_operand.hbm [shape: f32[2,32,256], index: 9, kind: output, shape index: {}]
  %s10 = sld [smem:[#allocation0]]
  $region119: #{tpu_custom_call.1} parent=0
    _
  %s12 = ssub.s32 1, %s10
  %s13 = scalar_select 0, %s12, %s10
  $region1: #{tpu_custom_call.1} parent=0
    #allocation2 [shape = 'u8[131072]{0}', space=vmem, size = 0x20000, scoped, tag = 'input window, operand 0']
    #allocation3 [shape = 's32[2]{0}', space=sflag, size = 0x8, scoped, tag = 'scoped memory for tpu_custom_call.1']
    #allocation4 [shape = 's32[2]{0}', space=sflag, size = 0x8, scoped, tag = 'scoped memory for tpu_custom_call.1']
    #allocation5 [shape = 'u8[131072]{0}', space=vmem, size = 0x20000, scoped, tag = 'input window, operand 1']
    #allocation6 [shape = 's32[2]{0}', space=sflag, size = 0x8, scoped, tag = 'scoped memory for tpu_custom_call.1']
    #allocation7 [shape = 'u8[131072]{0}', space=vmem, size = 0x20000, scoped, tag = 'input window, operand 2']
    #allocation8 [shape = 'u8[8192]{0}', space=vmem, size = 0x2000, scoped, tag = 'input window, operand 7, single buffered']
    #allocation9 [shape = 'u8[65536]{0}', space=vmem, size = 0x10000, scoped, tag = 'output window, operand 0']
    %14 = vsyncpa [#allocation3], 0
    %s15 = scalar_lea.sflag [#allocation3], 1
    %16 = vsyncpa %s15, 0
    %17 = vsyncpa [#allocation6], 0
    %s18 = scalar_lea.sflag [#allocation6], 1
    %19 = vsyncpa %s18, 0
    %20 = vsyncpa [#allocation4], 0
    %s21 = scalar_lea.sflag [#allocation4], 1
    %22 = vsyncpa %s21, 0
    loop: start=0, step=1, limit=4
    $region2: #{tpu_custom_call.1} parent=1 // loop_pre_header
      _
    $region3: #{tpu_custom_call.1} parent=1 // loop_header
      %s24 = sphi 0, %s28
      %p25 = scmp.ge.s32.totalorder %s24, 4
      %s34 = sphi 0, %s36
      %s37 = sphi 0, %s34
      %s38 = sphi 0, %s37
      %s54 = sphi 0, %s38
      %s62 = sphi 0, %s64
      %s65 = sphi 0, %s62
      %s66 = sphi 0, %s65
      %s82 = sphi 0, %s66
      %s88 = sphi 0, %s90
      %s91 = sphi 0, %s88
      %s92 = sphi 0, %s91
      %s108 = sphi 0, %s92
      %s112 = sphi 0, %s112
      %s114 = sphi 0, %s112
      %s115 = sphi 0, %s114
      %s129 = sphi 0, %s115
      %s133 = sphi 0, %s133
      %s135 = sphi 0, %s133
      %s136 = sphi 0, %s135
      %s150 = sphi 0, %s136
      %s154 = sphi 0, %s154
      %s156 = sphi 0, %s154
      %s157 = sphi 0, %s156
      %s171 = sphi 0, %s157
      %s175 = sphi 0, %s175
      %s177 = sphi 0, %s175
      %s178 = sphi 0, %s177
      %s192 = sphi 0, %s178
      %s196 = sphi 0, %s196
      %s198 = sphi 0, %s196
      %s199 = sphi 0, %s198
      %s213 = sphi 0, %s199
      %s217 = sphi 0, %s217
      %s219 = sphi 0, %s217
      %s220 = sphi 0, %s219
      %s234 = sphi 0, %s220
      %s240 = sphi 0, %s242
      %s243 = sphi 0, %s240
      %s244 = sphi 0, %s243
      %s260 = sphi 0, %s244
    $region4: #{tpu_custom_call.1} parent=1 // loop_header_branch
      %27 = sbr.rel (%p25) target = $region8
    $region5: #{tpu_custom_call.1} parent=1 // loop_body
      %s29 = ssub.s32 %s24, 1
      %s30 = ssub.s32 %s24, 2
      %s31 = sadd.s32 %s24, 1
      %s32 = ssub.s32 %s24, %s31
      %p33 = scmp.eq.s32.totalorder %s32, 0
      %s35 = sadd.s32 %s34, 1
      %s36 = scalar_select %p33, %s34, %s35
      %p39 = pneg %p33
      %p40 = scmp.eq.s32.totalorder %s24, 1
      %p41 = por %p39, %p40
      %p42 = scmp.ne.s32.totalorder %s34, %s37
      %p43 = scmp.eq.s32.totalorder %s24, 0
      %p44 = por %p42, %p43
      %p45 = scmp.ne.s32.totalorder %s34, %s37
      %p46 = scmp.eq.s32.totalorder %s29, 1
      %p47 = por %p45, %p46
      %p48 = scmp.ne.s32.totalorder %s37, %s38
      %p49 = scmp.eq.s32.totalorder %s29, 0
      %p50 = por %p48, %p49
      %p51 = scmp.ne.s32.totalorder %s37, %s38
      %p52 = scmp.eq.s32.totalorder %s30, 1
      %p53 = por %p51, %p52
      %p55 = scmp.ne.s32.totalorder %s38, %s54
      %p56 = scmp.eq.s32.totalorder %s30, 0
      %p57 = por %p55, %p56
      %s58 = sadd.s32 %s24, 2
      %s59 = sadd.s32 %s31, 2
      %s60 = ssub.s32 %s58, %s59
      %p61 = scmp.eq.s32.totalorder %s60, 0
      %s63 = sadd.s32 %s62, 1
      %s64 = scalar_select %p61, %s62, %s63
      %p67 = pneg %p61
      %p68 = scmp.eq.s32.totalorder %s24, 1
      %p69 = por %p67, %p68
      %p70 = scmp.ne.s32.totalorder %s62, %s65
      %p71 = scmp.eq.s32.totalorder %s24, 0
      %p72 = por %p70, %p71
      %p73 = scmp.ne.s32.totalorder %s62, %s65
      %p74 = scmp.eq.s32.totalorder %s29, 1
      %p75 = por %p73, %p74
      %p76 = scmp.ne.s32.totalorder %s65, %s66
      %p77 = scmp.eq.s32.totalorder %s29, 0
      %p78 = por %p76, %p77
      %p79 = scmp.ne.s32.totalorder %s65, %s66
      %p80 = scmp.eq.s32.totalorder %s30, 1
      %p81 = por %p79, %p80
      %p83 = scmp.ne.s32.totalorder %s66, %s82
      %p84 = scmp.eq.s32.totalorder %s30, 0
      %p85 = por %p83, %p84
      %s86 = ssub.s32 %s24, %s31
      %p87 = scmp.eq.s32.totalorder %s86, 0
      %s89 = sadd.s32 %s88, 1
      %s90 = scalar_select %p87, %s88, %s89
      %p93 = pneg %p87
      %p94 = scmp.eq.s32.totalorder %s24, 1
      %p95 = por %p93, %p94
      %p96 = scmp.ne.s32.totalorder %s88, %s91
      %p97 = scmp.eq.s32.totalorder %s24, 0
      %p98 = por %p96, %p97
      %p99 = scmp.ne.s32.totalorder %s88, %s91
      %p100 = scmp.eq.s32.totalorder %s29, 1
      %p101 = por %p99, %p100
      %p102 = scmp.ne.s32.totalorder %s91, %s92
      %p103 = scmp.eq.s32.totalorder %s29, 0
      %p104 = por %p102, %p103
      %p105 = scmp.ne.s32.totalorder %s91, %s92
      %p106 = scmp.eq.s32.totalorder %s30, 1
      %p107 = por %p105, %p106
      %p109 = scmp.ne.s32.totalorder %s92, %s108
      %p110 = scmp.eq.s32.totalorder %s30, 0
      %p111 = por %p109, %p110
      %s113 = sadd.s32 %s112, 1
      %p116 = scmp.eq.s32.totalorder %s24, 1
      %p117 = scmp.ne.s32.totalorder %s112, %s114
      %p118 = scmp.eq.s32.totalorder %s24, 0
      %p119 = por %p117, %p118
      %p120 = scmp.ne.s32.totalorder %s112, %s114
      %p121 = scmp.eq.s32.totalorder %s29, 1
      %p122 = por %p120, %p121
      %p123 = scmp.ne.s32.totalorder %s114, %s115
      %p124 = scmp.eq.s32.totalorder %s29, 0
      %p125 = por %p123, %p124
      %p126 = scmp.ne.s32.totalorder %s114, %s115
      %p127 = scmp.eq.s32.totalorder %s30, 1
      %p128 = por %p126, %p127
      %p130 = scmp.ne.s32.totalorder %s115, %s129
      %p131 = scmp.eq.s32.totalorder %s30, 0
      %p132 = por %p130, %p131
      %s134 = sadd.s32 %s133, 1
      %p137 = scmp.eq.s32.totalorder %s24, 1
      %p138 = scmp.ne.s32.totalorder %s133, %s135
      %p139 = scmp.eq.s32.totalorder %s24, 0
      %p140 = por %p138, %p139
      %p141 = scmp.ne.s32.totalorder %s133, %s135
      %p142 = scmp.eq.s32.totalorder %s29, 1
      %p143 = por %p141, %p142
      %p144 = scmp.ne.s32.totalorder %s135, %s136
      %p145 = scmp.eq.s32.totalorder %s29, 0
      %p146 = por %p144, %p145
      %p147 = scmp.ne.s32.totalorder %s135, %s136
      %p148 = scmp.eq.s32.totalorder %s30, 1
      %p149 = por %p147, %p148
      %p151 = scmp.ne.s32.totalorder %s136, %s150
      %p152 = scmp.eq.s32.totalorder %s30, 0
      %p153 = por %p151, %p152
      %s155 = sadd.s32 %s154, 1
      %p158 = scmp.eq.s32.totalorder %s24, 1
      %p159 = scmp.ne.s32.totalorder %s154, %s156
      %p160 = scmp.eq.s32.totalorder %s24, 0
      %p161 = por %p159, %p160
      %p162 = scmp.ne.s32.totalorder %s154, %s156
      %p163 = scmp.eq.s32.totalorder %s29, 1
      %p164 = por %p162, %p163
      %p165 = scmp.ne.s32.totalorder %s156, %s157
      %p166 = scmp.eq.s32.totalorder %s29, 0
      %p167 = por %p165, %p166
      %p168 = scmp.ne.s32.totalorder %s156, %s157
      %p169 = scmp.eq.s32.totalorder %s30, 1
      %p170 = por %p168, %p169
      %p172 = scmp.ne.s32.totalorder %s157, %s171
      %p173 = scmp.eq.s32.totalorder %s30, 0
      %p174 = por %p172, %p173
      %s176 = sadd.s32 %s175, 1
      %p179 = scmp.eq.s32.totalorder %s24, 1
      %p180 = scmp.ne.s32.totalorder %s175, %s177
      %p181 = scmp.eq.s32.totalorder %s24, 0
      %p182 = por %p180, %p181
      %p183 = scmp.ne.s32.totalorder %s175, %s177
      %p184 = scmp.eq.s32.totalorder %s29, 1
      %p185 = por %p183, %p184
      %p186 = scmp.ne.s32.totalorder %s177, %s178
      %p187 = scmp.eq.s32.totalorder %s29, 0
      %p188 = por %p186, %p187
      %p189 = scmp.ne.s32.totalorder %s177, %s178
      %p190 = scmp.eq.s32.totalorder %s30, 1
      %p191 = por %p189, %p190
      %p193 = scmp.ne.s32.totalorder %s178, %s192
      %p194 = scmp.eq.s32.totalorder %s30, 0
      %p195 = por %p193, %p194
      %s197 = sadd.s32 %s196, 1
      %p200 = scmp.eq.s32.totalorder %s24, 1
      %p201 = scmp.ne.s32.totalorder %s196, %s198
      %p202 = scmp.eq.s32.totalorder %s24, 0
      %p203 = por %p201, %p202
      %p204 = scmp.ne.s32.totalorder %s196, %s198
      %p205 = scmp.eq.s32.totalorder %s29, 1
      %p206 = por %p204, %p205
      %p207 = scmp.ne.s32.totalorder %s198, %s199
      %p208 = scmp.eq.s32.totalorder %s29, 0
      %p209 = por %p207, %p208
      %p210 = scmp.ne.s32.totalorder %s198, %s199
      %p211 = scmp.eq.s32.totalorder %s30, 1
      %p212 = por %p210, %p211
      %p214 = scmp.ne.s32.totalorder %s199, %s213
      %p215 = scmp.eq.s32.totalorder %s30, 0
      %p216 = por %p214, %p215
      %s218 = sadd.s32 %s217, 1
      %p221 = scmp.eq.s32.totalorder %s24, 1
      %p222 = scmp.ne.s32.totalorder %s217, %s219
      %p223 = scmp.eq.s32.totalorder %s24, 0
      %p224 = por %p222, %p223
      %p225 = scmp.ne.s32.totalorder %s217, %s219
      %p226 = scmp.eq.s32.totalorder %s29, 1
      %p227 = por %p225, %p226
      %p228 = scmp.ne.s32.totalorder %s219, %s220
      %p229 = scmp.eq.s32.totalorder %s29, 0
      %p230 = por %p228, %p229
      %p231 = scmp.ne.s32.totalorder %s219, %s220
      %p232 = scmp.eq.s32.totalorder %s30, 1
      %p233 = por %p231, %p232
      %p235 = scmp.ne.s32.totalorder %s220, %s234
      %p236 = scmp.eq.s32.totalorder %s30, 0
      %p237 = por %p235, %p236
      %s238 = ssub.s32 %s24, %s31
      %p239 = scmp.eq.s32.totalorder %s238, 0
      %s241 = sadd.s32 %s240, 1
      %s242 = scalar_select %p239, %s240, %s241
      %p245 = pneg %p239
      %p246 = scmp.eq.s32.totalorder %s24, 1
      %p247 = por %p245, %p246
      %p248 = scmp.ne.s32.totalorder %s240, %s243
      %p249 = scmp.eq.s32.totalorder %s24, 0
      %p250 = por %p248, %p249
      %p251 = scmp.ne.s32.totalorder %s240, %s243
      %p252 = scmp.eq.s32.totalorder %s29, 1
      %p253 = por %p251, %p252
      %p254 = scmp.ne.s32.totalorder %s243, %s244
      %p255 = scmp.eq.s32.totalorder %s29, 0
      %p256 = por %p254, %p255
      %p257 = scmp.ne.s32.totalorder %s243, %s244
      %p258 = scmp.eq.s32.totalorder %s30, 1
      %p259 = por %p257, %p258
      %p261 = scmp.ne.s32.totalorder %s244, %s260
      %p262 = scmp.eq.s32.totalorder %s30, 0
      %p263 = por %p261, %p262
      %p264 = scmp.le.s32.totalorder 1, %s24
      %p265 = scmp.lt.s32.totalorder %s24, 3
      %p266 = pnand %p264, %p265
      %p267 = pneg %p266
      // Predicated region
      $region9: #{tpu_custom_call.1} parent=5 // pred_check
        _
      $region10: #{tpu_custom_call.1} parent=5 // pred_check_branch
        %269 = sbr.rel (%p266) target = $region12
      $region11: #{tpu_custom_call.1} parent=5 // pred_region
        %s270 = ssub.s32 %s24, 1
        // Predicated region
        $region13: #{tpu_custom_call.1} parent=11 // pred_check
          %p271 = pneg %p125
        $region14: #{tpu_custom_call.1} parent=11 // pred_check_branch
          %273 = sbr.rel (%p271) target = $region16
        $region15: #{tpu_custom_call.1} parent=11 // pred_region
          _
        $region16: #{tpu_custom_call.1} parent=11 // pred_fallthru
          _
        // Predicated region
        $region17: #{tpu_custom_call.1} parent=11 // pred_check
          %p274 = pneg %p146
        $region18: #{tpu_custom_call.1} parent=11 // pred_check_branch
          %276 = sbr.rel (%p274) target = $region20
        $region19: #{tpu_custom_call.1} parent=11 // pred_region
          _
        $region20: #{tpu_custom_call.1} parent=11 // pred_fallthru
          _
        // Predicated region
        $region21: #{tpu_custom_call.1} parent=11 // pred_check
          %p277 = pneg %p167
        $region22: #{tpu_custom_call.1} parent=11 // pred_check_branch
          %279 = sbr.rel (%p277) target = $region24
        $region23: #{tpu_custom_call.1} parent=11 // pred_region
          _
        $region24: #{tpu_custom_call.1} parent=11 // pred_fallthru
          _
        // Predicated region
        $region25: #{tpu_custom_call.1} parent=11 // pred_check
          %p280 = pneg %p188
        $region26: #{tpu_custom_call.1} parent=11 // pred_check_branch
          %282 = sbr.rel (%p280) target = $region28
        $region27: #{tpu_custom_call.1} parent=11 // pred_region
          _
        $region28: #{tpu_custom_call.1} parent=11 // pred_fallthru
          _
        // Predicated region
        $region29: #{tpu_custom_call.1} parent=11 // pred_check
          %p283 = pneg %p209
        $region30: #{tpu_custom_call.1} parent=11 // pred_check_branch
          %285 = sbr.rel (%p283) target = $region32
        $region31: #{tpu_custom_call.1} parent=11 // pred_region
          %s287 = ssub.s32 256, 256
          %288 = vsyncadd [#allocation6], %s287
          %s289 = sshll.u32 [#allocation8], 4
          %s290 = int_to_ptr.vmem [resolvable:$true] %s289
          %295 = dma.hbm_to_vmem [thread:$0]  %s7, 256, %s290, [#allocation6], 64, 64, 4
        $region32: #{tpu_custom_call.1} parent=11 // pred_fallthru
          _
        // Predicated region
        $region33: #{tpu_custom_call.1} parent=11 // pred_check
          %p296 = pneg %p230
        $region34: #{tpu_custom_call.1} parent=11 // pred_check_branch
          %298 = sbr.rel (%p296) target = $region36
        $region35: #{tpu_custom_call.1} parent=11 // pred_region
          _
        $region36: #{tpu_custom_call.1} parent=11 // pred_fallthru
          _
      $region12: #{tpu_custom_call.1} parent=5 // pred_fallthru
        _
      %p299 = scmp.lt.s32.totalorder %s24, 2
      // Predicated region
      $region37: #{tpu_custom_call.1} parent=5 // pred_check
        %p300 = pneg %p299
      $region38: #{tpu_custom_call.1} parent=5 // pred_check_branch
        %302 = sbr.rel (%p300) target = $region40
      $region39: #{tpu_custom_call.1} parent=5 // pred_region
        // Predicated region
        $region41: #{tpu_custom_call.1} parent=39 // pred_check
          %p303 = pneg %p44
        $region42: #{tpu_custom_call.1} parent=39 // pred_check_branch
          %305 = sbr.rel (%p303) target = $region44
        $region43: #{tpu_custom_call.1} parent=39 // pred_region
          %s306 = sand.u32 %s34, 1
          %s307 = scalar_lea.sflag [#allocation3], %s306
          %s308 = sand.u32 %s34, 1
          %s309 = smul.addr %s308, 128
          %s310 = scalar_lea.vmem [#allocation2], %s309
          %s312 = ssub.s32 2048, 2048
          %313 = vsyncadd %s307, %s312
          %s314 = smul.addr %s24, 128
          %s315 = scalar_lea.hbm %s0, %s314
          %s316 = sshll.u32 %s310, 4
          %s317 = int_to_ptr.vmem [resolvable:$true] %s316
          %322 = dma.hbm_to_vmem [thread:$0]  %s315, 2048, %s317, %s307, 512, 128, 8
        $region44: #{tpu_custom_call.1} parent=39 // pred_fallthru
          _
        // Predicated region
        $region45: #{tpu_custom_call.1} parent=39 // pred_check
          %p323 = pneg %p72
        $region46: #{tpu_custom_call.1} parent=39 // pred_check_branch
          %325 = sbr.rel (%p323) target = $region48
        $region47: #{tpu_custom_call.1} parent=39 // pred_region
          %s326 = sand.u32 %s24, 1
          %s327 = scalar_lea.sflag [#allocation6], %s326
          %s328 = sand.u32 %s62, 1
          %s329 = smul.addr %s328, 128
          %s330 = scalar_lea.vmem [#allocation5], %s329
          %s331 = sadd.s32 %s24, 2
          %s333 = ssub.s32 2048, 2048
          %334 = vsyncadd %s327, %s333
          %s335 = smul.addr %s331, 128
          %s336 = scalar_lea.hbm %s1, %s335
          %s337 = sshll.u32 %s330, 4
          %s338 = int_to_ptr.vmem [resolvable:$true] %s337
          %343 = dma.hbm_to_vmem [thread:$0]  %s336, 2048, %s338, %s327, 512, 128, 8
        $region48: #{tpu_custom_call.1} parent=39 // pred_fallthru
          _
        // Predicated region
        $region49: #{tpu_custom_call.1} parent=39 // pred_check
          %p344 = pneg %p98
        $region50: #{tpu_custom_call.1} parent=39 // pred_check_branch
          %346 = sbr.rel (%p344) target = $region52
        $region51: #{tpu_custom_call.1} parent=39 // pred_region
          %s347 = sand.u32 %s88, 1
          %s348 = sand.u32 %s88, 1
          %s349 = smul.addr %s348, 128
          %s350 = scalar_lea.vmem [#allocation7], %s349
          %s351 = smul.addr %s24, 8
          %s352 = scalar_lea.vmem %s2, %s351
          // Predicated region
          $region53: #{tpu_custom_call.1} parent=51 // pred_check
            _
          $region54: #{tpu_custom_call.1} parent=51 // pred_check_branch
            %354 = sbr.rel (0) target = $region56
          $region55: #{tpu_custom_call.1} parent=51 // pred_region
            // Predicated region
            $region57: #{tpu_custom_call.1} parent=55 // pred_check
              _
            $region58: #{tpu_custom_call.1} parent=55 // pred_check_branch
              %356 = sbr.rel (0) target = $region60
            $region59: #{tpu_custom_call.1} parent=55 // pred_region
              // Predicated region
              $region72: #{tpu_custom_call.1} parent=59 // pred_check
                _
              $region73: #{tpu_custom_call.1} parent=59 // pred_check_branch
                %401 = sbr.rel (0) target = $region75
              $region74: #{tpu_custom_call.1} parent=59 // pred_region
                loop: start=0, step=1, limit=1
                $region76: #{tpu_custom_call.1} parent=74 // loop_pre_header
                  _
                $region77: #{tpu_custom_call.1} parent=74 // loop_header
                  %s403 = sphi 0, %s407
                  %p404 = scmp.ge.s32.totalorder %s403, 1
                  %s408 = sphi %s352, %s352
                  %s409 = sphi %s350, %s350
                $region78: #{tpu_custom_call.1} parent=74 // loop_header_branch
                  %406 = sbr.rel (%p404) target = $region82
                $region79: #{tpu_custom_call.1} parent=74 // loop_body
                  %v410 = vld [vmem:[%s408] sm:$0xff]
                  %411 = vst [vmem:[%s409] sm:$0xff] %v410
                  %v412 = vld [vmem:[%s408 + $0x10] sm:$0xff]
                  %413 = vst [vmem:[%s409 + $0x8] sm:$0xff] %v412
                  %v414 = vld [vmem:[%s408 + $0x20] sm:$0xff]
                  %415 = vst [vmem:[%s409 + $0x10] sm:$0xff] %v414
                  %v416 = vld [vmem:[%s408 + $0x30] sm:$0xff]
                  %417 = vst [vmem:[%s409 + $0x18] sm:$0xff] %v416
                  %v418 = vld [vmem:[%s408 + $0x40] sm:$0xff]
                  %419 = vst [vmem:[%s409 + $0x20] sm:$0xff] %v418
                  %v420 = vld [vmem:[%s408 + $0x50] sm:$0xff]
                  %421 = vst [vmem:[%s409 + $0x28] sm:$0xff] %v420
                  %v422 = vld [vmem:[%s408 + $0x60] sm:$0xff]
                  %423 = vst [vmem:[%s409 + $0x30] sm:$0xff] %v422
                  %v424 = vld [vmem:[%s408 + $0x70] sm:$0xff]
                  %425 = vst [vmem:[%s409 + $0x38] sm:$0xff] %v424
                  %v426 = vld [vmem:[%s408 + $0x80] sm:$0xff]
                  %427 = vst [vmem:[%s409 + $0x40] sm:$0xff] %v426
                  %v428 = vld [vmem:[%s408 + $0x90] sm:$0xff]
                  %429 = vst [vmem:[%s409 + $0x48] sm:$0xff] %v428
                  %v430 = vld [vmem:[%s408 + $0xa0] sm:$0xff]
                  %431 = vst [vmem:[%s409 + $0x50] sm:$0xff] %v430
                  %v432 = vld [vmem:[%s408 + $0xb0] sm:$0xff]
                  %433 = vst [vmem:[%s409 + $0x58] sm:$0xff] %v432
                  %v434 = vld [vmem:[%s408 + $0xc0] sm:$0xff]
                  %435 = vst [vmem:[%s409 + $0x60] sm:$0xff] %v434
                  %v436 = vld [vmem:[%s408 + $0xd0] sm:$0xff]
                  %437 = vst [vmem:[%s409 + $0x68] sm:$0xff] %v436
                  %v438 = vld [vmem:[%s408 + $0xe0] sm:$0xff]
                  %439 = vst [vmem:[%s409 + $0x70] sm:$0xff] %v438
                  %v440 = vld [vmem:[%s408 + $0xf0] sm:$0xff]
                  %441 = vst [vmem:[%s409 + $0x78] sm:$0xff] %v440
                $region80: #{tpu_custom_call.1} parent=74 // loop_footer
                  %s407 = sadd.s32 1, %s403
                $region81: #{tpu_custom_call.1} parent=74 // loop_footer_branch
                  %402 = sbr.rel target = $region77
                $region82: #{tpu_custom_call.1} parent=74 // loop_exit
                  _
              $region75: #{tpu_custom_call.1} parent=59 // pred_fallthru
                _
              // Predicated region
              $region83: #{tpu_custom_call.1} parent=59 // pred_check
                _
              $region84: #{tpu_custom_call.1} parent=59 // pred_check_branch
                %443 = sbr.rel target = $region86
              $region85: #{tpu_custom_call.1} parent=59 // pred_region
                _
              $region86: #{tpu_custom_call.1} parent=59 // pred_fallthru
                _
            $region60: #{tpu_custom_call.1} parent=55 // pred_fallthru
              _
            // Predicated region
            $region61: #{tpu_custom_call.1} parent=55 // pred_check
              _
            $region62: #{tpu_custom_call.1} parent=55 // pred_check_branch
              %358 = sbr.rel target = $region64
            $region63: #{tpu_custom_call.1} parent=55 // pred_region
              loop: start=0, step=1, limit=1
              $region65: #{tpu_custom_call.1} parent=63 // loop_pre_header
                _
              $region66: #{tpu_custom_call.1} parent=63 // loop_header
                %s361 = sphi 0, %s365
                %p362 = scmp.ge.s32.totalorder %s361, 1
                %s366 = sphi %s352, %s352
                %s367 = sphi %s350, %s350
              $region67: #{tpu_custom_call.1} parent=63 // loop_header_branch
                %364 = sbr.rel (%p362) target = $region71
              $region68: #{tpu_custom_call.1} parent=63 // loop_body
                %v368 = vld [vmem:[%s366] sm:$0xff]
                %369 = vst [vmem:[%s367] sm:$0xff] %v368
                %v370 = vld [vmem:[%s366 + $0x10] sm:$0xff]
                %371 = vst [vmem:[%s367 + $0x8] sm:$0xff] %v370
                %v372 = vld [vmem:[%s366 + $0x20] sm:$0xff]
                %373 = vst [vmem:[%s367 + $0x10] sm:$0xff] %v372
                %v374 = vld [vmem:[%s366 + $0x30] sm:$0xff]
                %375 = vst [vmem:[%s367 + $0x18] sm:$0xff] %v374
                %v376 = vld [vmem:[%s366 + $0x40] sm:$0xff]
                %377 = vst [vmem:[%s367 + $0x20] sm:$0xff] %v376
                %v378 = vld [vmem:[%s366 + $0x50] sm:$0xff]
                %379 = vst [vmem:[%s367 + $0x28] sm:$0xff] %v378
                %v380 = vld [vmem:[%s366 + $0x60] sm:$0xff]
                %381 = vst [vmem:[%s367 + $0x30] sm:$0xff] %v380
                %v382 = vld [vmem:[%s366 + $0x70] sm:$0xff]
                %383 = vst [vmem:[%s367 + $0x38] sm:$0xff] %v382
                %v384 = vld [vmem:[%s366 + $0x80] sm:$0xff]
                %385 = vst [vmem:[%s367 + $0x40] sm:$0xff] %v384
                %v386 = vld [vmem:[%s366 + $0x90] sm:$0xff]
                %387 = vst [vmem:[%s367 + $0x48] sm:$0xff] %v386
                %v388 = vld [vmem:[%s366 + $0xa0] sm:$0xff]
                %389 = vst [vmem:[%s367 + $0x50] sm:$0xff] %v388
                %v390 = vld [vmem:[%s366 + $0xb0] sm:$0xff]
                %391 = vst [vmem:[%s367 + $0x58] sm:$0xff] %v390
                %v392 = vld [vmem:[%s366 + $0xc0] sm:$0xff]
                %393 = vst [vmem:[%s367 + $0x60] sm:$0xff] %v392
                %v394 = vld [vmem:[%s366 + $0xd0] sm:$0xff]
                %395 = vst [vmem:[%s367 + $0x68] sm:$0xff] %v394
                %v396 = vld [vmem:[%s366 + $0xe0] sm:$0xff]
                %397 = vst [vmem:[%s367 + $0x70] sm:$0xff] %v396
                %v398 = vld [vmem:[%s366 + $0xf0] sm:$0xff]
                %399 = vst [vmem:[%s367 + $0x78] sm:$0xff] %v398
              $region69: #{tpu_custom_call.1} parent=63 // loop_footer
                %s365 = sadd.s32 1, %s361
              $region70: #{tpu_custom_call.1} parent=63 // loop_footer_branch
                %360 = sbr.rel target = $region66
              $region71: #{tpu_custom_call.1} parent=63 // loop_exit
                _
            $region64: #{tpu_custom_call.1} parent=55 // pred_fallthru
              _
          $region56: #{tpu_custom_call.1} parent=51 // pred_fallthru
            _
          %444 = vnop
        $region52: #{tpu_custom_call.1} parent=39 // pred_fallthru
          _
      $region40: #{tpu_custom_call.1} parent=5 // pred_fallthru
        _
      %p445 = scmp.le.s32.totalorder 1, %s24
      %p446 = scmp.lt.s32.totalorder %s24, 3
      %p447 = pnand %p445, %p446
      %p448 = pneg %p447
      // Predicated region
      $region87: #{tpu_custom_call.1} parent=5 // pred_check
        _
      $region88: #{tpu_custom_call.1} parent=5 // pred_check_branch
        %450 = sbr.rel (%p447) target = $region90
      $region89: #{tpu_custom_call.1} parent=5 // pred_region
        %s451 = ssub.s32 %s24, 1
        %s452 = sand.u32 %s37, 1
        %s453 = scalar_lea.sflag [#allocation3], %s452
        %s454 = sand.u32 %s37, 1
        %s455 = smul.addr %s454, 128
        %s456 = scalar_lea.vmem [#allocation2], %s455
        // Predicated region
        $region91: #{tpu_custom_call.1} parent=89 // pred_check
          %p457 = pneg %p50
        $region92: #{tpu_custom_call.1} parent=89 // pred_check_branch
          %459 = sbr.rel (%p457) target = $region94
        $region93: #{tpu_custom_call.1} parent=89 // pred_region
          %460 = dma.done %s453, 2048
        $region94: #{tpu_custom_call.1} parent=89 // pred_fallthru
          _
        %s461 = sand.u32 %s29, 1
        %s462 = scalar_lea.sflag [#allocation6], %s461
        %s463 = sand.u32 %s65, 1
        %s464 = smul.addr %s463, 128
        %s465 = scalar_lea.vmem [#allocation5], %s464
        // Predicated region
        $region95: #{tpu_custom_call.1} parent=89 // pred_check
          %p466 = pneg %p78
        $region96: #{tpu_custom_call.1} parent=89 // pred_check_branch
          %468 = sbr.rel (%p466) target = $region98
        $region97: #{tpu_custom_call.1} parent=89 // pred_region
          %469 = dma.done %s462, 2048
        $region98: #{tpu_custom_call.1} parent=89 // pred_fallthru
          _
        %s470 = sand.u32 %s91, 1
        %s471 = sand.u32 %s91, 1
        %s472 = smul.addr %s471, 128
        %s473 = scalar_lea.vmem [#allocation7], %s472
        // Predicated region
        $region99: #{tpu_custom_call.1} parent=89 // pred_check
          %p474 = pneg %p104
        $region100: #{tpu_custom_call.1} parent=89 // pred_check_branch
          %476 = sbr.rel (%p474) target = $region102
        $region101: #{tpu_custom_call.1} parent=89 // pred_region
          _
        $region102: #{tpu_custom_call.1} parent=89 // pred_fallthru
          _
        // Predicated region
        $region103: #{tpu_custom_call.1} parent=89 // pred_check
          %p477 = pneg %p209
        $region104: #{tpu_custom_call.1} parent=89 // pred_check_branch
          %479 = sbr.rel (%p477) target = $region106
        $region105: #{tpu_custom_call.1} parent=89 // pred_region
          %480 = dma.done [#allocation6], 256
        $region106: #{tpu_custom_call.1} parent=89 // pred_fallthru
          _
        %s481 = sand.u32 %s37, 1
        %s482 = scalar_lea.sflag [#allocation3], %s481
        %s483 = sand.u32 %s37, 1
        %s484 = smul.addr %s483, 128
        %s485 = scalar_lea.vmem [#allocation2], %s484
        %p486 = pneg %p50
        %p487 = pneg %p47
        %s488 = sand.u32 %s29, 1
        %s489 = scalar_lea.sflag [#allocation6], %s488
        %s490 = sand.u32 %s65, 1
        %s491 = smul.addr %s490, 128
        %s492 = scalar_lea.vmem [#allocation5], %s491
        %p493 = pneg %p78
        %p494 = pneg %p75
        %s495 = sand.u32 %s91, 1
        %s496 = sand.u32 %s91, 1
        %s497 = smul.addr %s496, 128
        %s498 = scalar_lea.vmem [#allocation7], %s497
        %p499 = pneg %p104
        %p500 = pneg %p101
        %p501 = pneg %p125
        %p502 = pneg %p122
        %p503 = pneg %p146
        %p504 = pneg %p143
        %p505 = pneg %p167
        %p506 = pneg %p164
        %p507 = pneg %p188
        %p508 = pneg %p185
        %p509 = pneg %p209
        %p510 = pneg %p206
        %p511 = pneg %p230
        %p512 = pneg %p227
        %p513 = pneg %p256
        %p514 = pneg %p253
        %s515 = sand.u32 %s243, 1
        %s516 = scalar_lea.sflag [#allocation4], %s515
        %s517 = sand.u32 %s243, 1
        %s518 = smul.addr %s517, 64
        %s519 = scalar_lea.vmem [#allocation9], %s518
        %s520 = sadd.s32 %s29, 2
        %v522 = vld [vmem:[%s3] sm:$0xf]
        %v523 = vld [vmem:[%s3 + $0x4] sm:$0xf]
        %v524 = vld [vmem:[%s3 + $0x8] sm:$0xf]
        %v525 = vld [vmem:[%s3 + $0xc] sm:$0xf]
        %s526 = scalar_lea.vmem %s3, 16
        %v527 = vld [vmem:[%s526] sm:$0xf]
        %v528 = vld [vmem:[%s526 + $0x4] sm:$0xf]
        %v529 = vld [vmem:[%s526 + $0x8] sm:$0xf]
        %v530 = vld [vmem:[%s526 + $0xc] sm:$0xf]
        %s531 = scalar_lea.vmem %s3, 32
        %v532 = vld [vmem:[%s531] sm:$0xf]
        %v533 = vld [vmem:[%s531 + $0x4] sm:$0xf]
        %v534 = vld [vmem:[%s531 + $0x8] sm:$0xf]
        %v535 = vld [vmem:[%s531 + $0xc] sm:$0xf]
        %v536 = vld [vmem:[%s456] sm:$0xff]
        %v537 = vld [vmem:[%s456 + $0x8] sm:$0xff]
        %v538 = vld [vmem:[%s456 + $0x10] sm:$0xff]
        %v539 = vld [vmem:[%s456 + $0x18] sm:$0xff]
        %v540 = vld [vmem:[%s456 + $0x20] sm:$0xff]
        %v541 = vld [vmem:[%s456 + $0x28] sm:$0xff]
        %v542 = vld [vmem:[%s456 + $0x30] sm:$0xff]
        %v543 = vld [vmem:[%s456 + $0x38] sm:$0xff]
        %v544 = vpack.c.bf16 %v537, %v536
        %v545 = vpack.c.bf16 %v539, %v538
        %v546 = vpack.c.bf16 %v541, %v540
        %v547 = vpack.c.bf16 %v543, %v542
        %v548 = vld [vmem:[%s465] sm:$0xff]
        %v549 = vld [vmem:[%s465 + $0x8] sm:$0xff]
        %v550 = vld [vmem:[%s465 + $0x10] sm:$0xff]
        %v551 = vld [vmem:[%s465 + $0x18] sm:$0xff]
        %v552 = vld [vmem:[%s465 + $0x20] sm:$0xff]
        %v553 = vld [vmem:[%s465 + $0x28] sm:$0xff]
        %v554 = vld [vmem:[%s465 + $0x30] sm:$0xff]
        %v555 = vld [vmem:[%s465 + $0x38] sm:$0xff]
        %v556 = vpack.c.bf16 %v549, %v548
        %v557 = vpack.c.bf16 %v551, %v550
        %v558 = vpack.c.bf16 %v553, %v552
        %v559 = vpack.c.bf16 %v555, %v554
        %v560 = vld [vmem:[%s473] sm:$0xff]
        %v561 = vld [vmem:[%s473 + $0x8] sm:$0xff]
        %v562 = vld [vmem:[%s473 + $0x10] sm:$0xff]
        %v563 = vld [vmem:[%s473 + $0x18] sm:$0xff]
        %v564 = vld [vmem:[%s473 + $0x20] sm:$0xff]
        %v565 = vld [vmem:[%s473 + $0x28] sm:$0xff]
        %v566 = vld [vmem:[%s473 + $0x30] sm:$0xff]
        %v567 = vld [vmem:[%s473 + $0x38] sm:$0xff]
        %v568 = vpack.c.bf16 %v561, %v560
        %v569 = vpack.c.bf16 %v563, %v562
        %v570 = vpack.c.bf16 %v565, %v564
        %v571 = vpack.c.bf16 %v567, %v566
        %v572 = vld [vmem:[%s4] sm:$0xff]
        %v573 = vld [vmem:[%s4 + $0x8] sm:$0xff]
        %v574 = vld [vmem:[%s4 + $0x10] sm:$0xff]
        %v575 = vld [vmem:[%s4 + $0x18] sm:$0xff]
        %577 = vset.pattern.permute.xlu0 0
        %578 = vperm.xlu0 %577, %v572
        %v579 = vpop.permute.xlu0 %578
        %582 = vset.pattern.permute.xlu0 0
        %583 = vperm.xlu0 %582, %v573
        %v584 = vpop.permute.xlu0 %583
        %587 = vset.pattern.permute.xlu0 0
        %588 = vperm.xlu0 %587, %v574
        %v589 = vpop.permute.xlu0 %588
        %592 = vset.pattern.permute.xlu0 0
        %593 = vperm.xlu0 %592, %v575
        %v594 = vpop.permute.xlu0 %593
        %v600 = vunpack.c.l.b16 %v522
        %v601 = vunpack.c.l.b16 %v523
        %v602 = vunpack.c.l.b16 %v524
        %v603 = vunpack.c.l.b16 %v525
        %v604 = vpack.c.b16 %v601, %v600
        %v605 = vpack.c.b16 %v603, %v602
        %vm606 = vcmask 523264
        %v608 = vsel %vm606, %v604, 0
        %v611 = vsel %vm606, %v605, 0
        %613 = vmatprep.subr.bf16.mxu0 0
        %614 = vmatpush1.bf16.msra.mxu0 %v544
        %615 = vmatprep.subr.bf16.mxu0 0
        %616 = vmatpush1.bf16.msra.mxu0 %v545
        %617 = vmatprep.subr.bf16.mxu0 0
        %618 = vmatpush1.bf16.msra.mxu0 %v546
        %619 = vmatprep.subr.bf16.mxu0 0
        %620 = vmatpush1.bf16.msra.mxu0 %v547
        %621 = vmatprep.subr.bf16.mxu0 0
        %622 = vmatpush1.bf16.msra.mxu0 0
        %623 = vmatprep.subr.bf16.mxu0 0
        %624 = vmatpush1.bf16.msra.mxu0 0
        %625 = vmatprep.subr.bf16.mxu0 0
        %626 = vmatpush1.bf16.msra.mxu0 0
        %627 = vmatprep.subr.bf16.mxu0 0
        %628 = vmatpush1.bf16.msra.mxu0 0
        %629 = vmatprep.subr.bf16.mxu0 0
        %630 = vmatpush1.bf16.msra.mxu0 0
        %631 = vmatprep.subr.bf16.mxu0 0
        %632 = vmatpush1.bf16.msra.mxu0 0
        %633 = vmatprep.subr.bf16.mxu0 0
        %634 = vmatpush1.bf16.msra.mxu0 0
        %635 = vmatprep.subr.bf16.mxu0 0
        %636 = vmatpush1.bf16.msra.mxu0 0
        %637 = vmatprep.subr.bf16.mxu0 0
        %638 = vmatpush1.bf16.msra.mxu0 0
        %639 = vmatprep.subr.bf16.mxu0 0
        %640 = vmatpush1.bf16.msra.mxu0 0
        %641 = vmatprep.subr.bf16.mxu0 0
        %642 = vmatpush1.bf16.msra.mxu0 0
        %643 = vmatprep.subr.bf16.mxu0 0
        %644 = vmatpush1.bf16.msra.mxu0 0
        %645 = vmatprep.mubr.bf16.mxu0 0
        %646 = vmatmul.mubr.bf16.gmra.mrb[0].mxu0 %v608
        %v647 = vpop.f32.mrb[0].mxu0
        %v648 = vadd.f32 %v579, %v647
        %v649 = vpop.f32.mrb[0].mxu0
        %v650 = vpop.f32.mrb[0].mxu0
        %v651 = vadd.f32 %v584, %v650
        %v652 = vpop.f32.mrb[0].mxu0
        %653 = vmatprep.mubr.bf16.mxu0 0
        %654 = vmatmul.mubr.bf16.gmra.mrb[0].mxu0 %v611
        %v655 = vpop.f32.mrb[0].mxu0
        %v656 = vadd.f32 %v589, %v655
        %v657 = vpop.f32.mrb[0].mxu0
        %v658 = vpop.f32.mrb[0].mxu0
        %v659 = vadd.f32 %v594, %v658
        %v660 = vpop.f32.mrb[0].mxu0
        %661 = vdwg.mxu0
        %v662 = vmax.f32 %v648, 0.0
        %v663 = vmax.f32 %v651, 0.0
        %v664 = vmax.f32 %v656, 0.0
        %v665 = vmax.f32 %v659, 0.0
        %s666 = scalar_lea.vmem %s4, 32
        %v667 = vld [vmem:[%s666] sm:$0xff]
        %v668 = vld [vmem:[%s666 + $0x8] sm:$0xff]
        %v669 = vld [vmem:[%s666 + $0x10] sm:$0xff]
        %v670 = vld [vmem:[%s666 + $0x18] sm:$0xff]
        %672 = vset.pattern.permute.xlu0 0
        %673 = vperm.xlu0 %672, %v667
        %v674 = vpop.permute.xlu0 %673
        %677 = vset.pattern.permute.xlu0 0
        %678 = vperm.xlu0 %677, %v668
        %v679 = vpop.permute.xlu0 %678
        %682 = vset.pattern.permute.xlu0 0
        %683 = vperm.xlu0 %682, %v669
        %v684 = vpop.permute.xlu0 %683
        %687 = vset.pattern.permute.xlu0 0
        %688 = vperm.xlu0 %687, %v670
        %v689 = vpop.permute.xlu0 %688
        %v695 = vunpack.c.l.b16 %v527
        %v696 = vunpack.c.l.b16 %v528
        %v697 = vunpack.c.l.b16 %v529
        %v698 = vunpack.c.l.b16 %v530
        %v699 = vpack.c.b16 %v696, %v695
        %v700 = vpack.c.b16 %v698, %v697
        %v702 = vsel %vm606, %v699, 0
        %v705 = vsel %vm606, %v700, 0
        %707 = vmatprep.subr.bf16.mxu0 0
        %708 = vmatpush1.bf16.msra.mxu0 %v568
        %709 = vmatprep.subr.bf16.mxu0 0
        %710 = vmatpush1.bf16.msra.mxu0 %v569
        %711 = vmatprep.subr.bf16.mxu0 0
        %712 = vmatpush1.bf16.msra.mxu0 %v570
        %713 = vmatprep.subr.bf16.mxu0 0
        %714 = vmatpush1.bf16.msra.mxu0 %v571
        %715 = vmatprep.subr.bf16.mxu0 0
        %716 = vmatpush1.bf16.msra.mxu0 0
        %717 = vmatprep.subr.bf16.mxu0 0
        %718 = vmatpush1.bf16.msra.mxu0 0
        %719 = vmatprep.subr.bf16.mxu0 0
        %720 = vmatpush1.bf16.msra.mxu0 0
        %721 = vmatprep.subr.bf16.mxu0 0
        %722 = vmatpush1.bf16.msra.mxu0 0
        %723 = vmatprep.subr.bf16.mxu0 0
        %724 = vmatpush1.bf16.msra.mxu0 0
        %725 = vmatprep.subr.bf16.mxu0 0
        %726 = vmatpush1.bf16.msra.mxu0 0
        %727 = vmatprep.subr.bf16.mxu0 0
        %728 = vmatpush1.bf16.msra.mxu0 0
        %729 = vmatprep.subr.bf16.mxu0 0
        %730 = vmatpush1.bf16.msra.mxu0 0
        %731 = vmatprep.subr.bf16.mxu0 0
        %732 = vmatpush1.bf16.msra.mxu0 0
        %733 = vmatprep.subr.bf16.mxu0 0
        %734 = vmatpush1.bf16.msra.mxu0 0
        %735 = vmatprep.subr.bf16.mxu0 0
        %736 = vmatpush1.bf16.msra.mxu0 0
        %737 = vmatprep.subr.bf16.mxu0 0
        %738 = vmatpush1.bf16.msra.mxu0 0
        %739 = vmatprep.mubr.bf16.mxu0 0
        %740 = vmatmul.mubr.bf16.gmra.mrb[0].mxu0 %v702
        %v741 = vpop.f32.mrb[0].mxu0
        %v742 = vadd.f32 %v674, %v741
        %v743 = vpop.f32.mrb[0].mxu0
        %v744 = vpop.f32.mrb[0].mxu0
        %v745 = vadd.f32 %v679, %v744
        %v746 = vpop.f32.mrb[0].mxu0
        %747 = vmatprep.mubr.bf16.mxu0 0
        %748 = vmatmul.mubr.bf16.gmra.mrb[0].mxu0 %v705
        %v749 = vpop.f32.mrb[0].mxu0
        %v750 = vadd.f32 %v684, %v749
        %v751 = vpop.f32.mrb[0].mxu0
        %v752 = vpop.f32.mrb[0].mxu0
        %v753 = vadd.f32 %v689, %v752
        %v754 = vpop.f32.mrb[0].mxu0
        %755 = vdwg.mxu0
        %v756 = vmax.f32 %v742, 0.0
        %v757 = vmax.f32 %v745, 0.0
        %v758 = vmax.f32 %v750, 0.0
        %v759 = vmax.f32 %v753, 0.0
        %s760 = scalar_lea.vmem %s4, 64
        %v761 = vld [vmem:[%s760] sm:$0xff]
        %v762 = vld [vmem:[%s760 + $0x8] sm:$0xff]
        %v763 = vld [vmem:[%s760 + $0x10] sm:$0xff]
        %v764 = vld [vmem:[%s760 + $0x18] sm:$0xff]
        %766 = vset.pattern.permute.xlu0 0
        %767 = vperm.xlu0 %766, %v761
        %v768 = vpop.permute.xlu0 %767
        %771 = vset.pattern.permute.xlu0 0
        %772 = vperm.xlu0 %771, %v762
        %v773 = vpop.permute.xlu0 %772
        %776 = vset.pattern.permute.xlu0 0
        %777 = vperm.xlu0 %776, %v763
        %v778 = vpop.permute.xlu0 %777
        %781 = vset.pattern.permute.xlu0 0
        %782 = vperm.xlu0 %781, %v764
        %v783 = vpop.permute.xlu0 %782
        %v789 = vunpack.c.l.b16 %v532
        %v790 = vunpack.c.l.b16 %v533
        %v791 = vunpack.c.l.b16 %v534
        %v792 = vunpack.c.l.b16 %v535
        %v793 = vpack.c.b16 %v790, %v789
        %v794 = vpack.c.b16 %v792, %v791
        %v796 = vsel %vm606, %v793, 0
        %v799 = vsel %vm606, %v794, 0
        %801 = vmatprep.subr.bf16.mxu0 0
        %802 = vmatpush1.bf16.msra.mxu0 %v556
        %803 = vmatprep.subr.bf16.mxu0 0
        %804 = vmatpush1.bf16.msra.mxu0 %v557
        %805 = vmatprep.subr.bf16.mxu0 0
        %806 = vmatpush1.bf16.msra.mxu0 %v558
        %807 = vmatprep.subr.bf16.mxu0 0
        %808 = vmatpush1.bf16.msra.mxu0 %v559
        %809 = vmatprep.subr.bf16.mxu0 0
        %810 = vmatpush1.bf16.msra.mxu0 0
        %811 = vmatprep.subr.bf16.mxu0 0
        %812 = vmatpush1.bf16.msra.mxu0 0
        %813 = vmatprep.subr.bf16.mxu0 0
        %814 = vmatpush1.bf16.msra.mxu0 0
        %815 = vmatprep.subr.bf16.mxu0 0
        %816 = vmatpush1.bf16.msra.mxu0 0
        %817 = vmatprep.subr.bf16.mxu0 0
        %818 = vmatpush1.bf16.msra.mxu0 0
        %819 = vmatprep.subr.bf16.mxu0 0
        %820 = vmatpush1.bf16.msra.mxu0 0
        %821 = vmatprep.subr.bf16.mxu0 0
        %822 = vmatpush1.bf16.msra.mxu0 0
        %823 = vmatprep.subr.bf16.mxu0 0
        %824 = vmatpush1.bf16.msra.mxu0 0
        %825 = vmatprep.subr.bf16.mxu0 0
        %826 = vmatpush1.bf16.msra.mxu0 0
        %827 = vmatprep.subr.bf16.mxu0 0
        %828 = vmatpush1.bf16.msra.mxu0 0
        %829 = vmatprep.subr.bf16.mxu0 0
        %830 = vmatpush1.bf16.msra.mxu0 0
        %831 = vmatprep.subr.bf16.mxu0 0
        %832 = vmatpush1.bf16.msra.mxu0 0
        %833 = vmatprep.mubr.bf16.mxu0 0
        %834 = vmatmul.mubr.bf16.gmra.mrb[0].mxu0 %v796
        %v835 = vpop.f32.mrb[0].mxu0
        %v836 = vadd.f32 %v768, %v835
        %v837 = vpop.f32.mrb[0].mxu0
        %v838 = vpop.f32.mrb[0].mxu0
        %v839 = vadd.f32 %v773, %v838
        %v840 = vpop.f32.mrb[0].mxu0
        %841 = vmatprep.mubr.bf16.mxu0 0
        %842 = vmatmul.mubr.bf16.gmra.mrb[0].mxu0 %v799
        %v843 = vpop.f32.mrb[0].mxu0
        %v844 = vadd.f32 %v778, %v843
        %v845 = vpop.f32.mrb[0].mxu0
        %v846 = vpop.f32.mrb[0].mxu0
        %v847 = vadd.f32 %v783, %v846
        %v848 = vpop.f32.mrb[0].mxu0
        %849 = vdwg.mxu0
        %v850 = vmax.f32 %v836, 0.0
        %v851 = vmax.f32 %v839, 0.0
        %v852 = vmax.f32 %v844, 0.0
        %v853 = vmax.f32 %v847, 0.0
        %v854 = vmul.f32 %v850, %v756
        %v855 = vmul.f32 %v851, %v757
        %v856 = vmul.f32 %v852, %v758
        %v857 = vmul.f32 %v853, %v759
        %v858 = vld [vmem:[%s5] sm:$0xf]
        %v859 = vld [vmem:[%s5 + $0x4] sm:$0xf]
        %v860 = vld [vmem:[%s5 + $0x8] sm:$0xf]
        %v861 = vld [vmem:[%s5 + $0xc] sm:$0xf]
        %v862 = vld [vmem:[%s5 + $0x10] sm:$0xf]
        %v863 = vld [vmem:[%s5 + $0x14] sm:$0xf]
        %v864 = vld [vmem:[%s5 + $0x18] sm:$0xf]
        %v865 = vld [vmem:[%s5 + $0x1c] sm:$0xf]
        %v866 = vld [vmem:[%s5 + $0x20] sm:$0xf]
        %v867 = vld [vmem:[%s5 + $0x24] sm:$0xf]
        %v868 = vld [vmem:[%s5 + $0x28] sm:$0xf]
        %v869 = vld [vmem:[%s5 + $0x2c] sm:$0xf]
        %v870 = vpack.c.bf16 %v663, %v662
        %v871 = vpack.c.bf16 %v665, %v664
        %v872 = vld [vmem:[%s6] sm:$0xff]
        %v873 = vld [vmem:[%s6 + $0x8] sm:$0xff]
        %v874 = vld [vmem:[%s6 + $0x10] sm:$0xff]
        %v875 = vld [vmem:[%s6 + $0x18] sm:$0xff]
        %v876 = vld [vmem:[%s6 + $0x20] sm:$0xff]
        %v877 = vld [vmem:[%s6 + $0x28] sm:$0xff]
        %v878 = vld [vmem:[%s6 + $0x30] sm:$0xff]
        %v879 = vld [vmem:[%s6 + $0x38] sm:$0xff]
        %v880 = vld [vmem:[%s6 + $0x40] sm:$0xff]
        %v881 = vld [vmem:[%s6 + $0x48] sm:$0xff]
        %v882 = vld [vmem:[%s6 + $0x50] sm:$0xff]
        %v883 = vld [vmem:[%s6 + $0x58] sm:$0xff]
        %885 = vset.pattern.permute.xlu0 0
        %886 = vperm.xlu0 %885, %v872
        %v887 = vpop.permute.xlu0 %886
        %890 = vset.pattern.permute.xlu0 0
        %891 = vperm.xlu0 %890, %v873
        %v892 = vpop.permute.xlu0 %891
        %895 = vset.pattern.permute.xlu0 0
        %896 = vperm.xlu0 %895, %v874
        %v897 = vpop.permute.xlu0 %896
        %900 = vset.pattern.permute.xlu0 0
        %901 = vperm.xlu0 %900, %v875
        %v902 = vpop.permute.xlu0 %901
        %905 = vset.pattern.permute.xlu0 0
        %906 = vperm.xlu0 %905, %v876
        %v907 = vpop.permute.xlu0 %906
        %910 = vset.pattern.permute.xlu0 0
        %911 = vperm.xlu0 %910, %v877
        %v912 = vpop.permute.xlu0 %911
        %915 = vset.pattern.permute.xlu0 0
        %916 = vperm.xlu0 %915, %v878
        %v917 = vpop.permute.xlu0 %916
        %920 = vset.pattern.permute.xlu0 0
        %921 = vperm.xlu0 %920, %v879
        %v922 = vpop.permute.xlu0 %921
        %925 = vset.pattern.permute.xlu0 0
        %926 = vperm.xlu0 %925, %v880
        %v927 = vpop.permute.xlu0 %926
        %930 = vset.pattern.permute.xlu0 0
        %931 = vperm.xlu0 %930, %v881
        %v932 = vpop.permute.xlu0 %931
        %935 = vset.pattern.permute.xlu0 0
        %936 = vperm.xlu0 %935, %v882
        %v937 = vpop.permute.xlu0 %936
        %940 = vset.pattern.permute.xlu0 0
        %941 = vperm.xlu0 %940, %v883
        %v942 = vpop.permute.xlu0 %941
        %v956 = vunpack.c.l.b16 %v858
        %v957 = vunpack.c.l.b16 %v859
        %v958 = vunpack.c.l.b16 %v860
        %v959 = vunpack.c.l.b16 %v861
        %v960 = vunpack.c.l.b16 %v862
        %v961 = vunpack.c.l.b16 %v863
        %v962 = vunpack.c.l.b16 %v864
        %v963 = vunpack.c.l.b16 %v865
        %v964 = vunpack.c.l.b16 %v866
        %v965 = vunpack.c.l.b16 %v867
        %v966 = vunpack.c.l.b16 %v868
        %v967 = vunpack.c.l.b16 %v869
        %v968 = vpack.c.b16 %v957, %v956
        %v969 = vpack.c.b16 %v959, %v958
        %v970 = vpack.c.b16 %v961, %v960
        %v971 = vpack.c.b16 %v963, %v962
        %v972 = vpack.c.b16 %v965, %v964
        %v973 = vpack.c.b16 %v967, %v966
        %vm974 = vcmask 261120
        %v976 = vsel %vm974, %v968, 0
        %v979 = vsel %vm974, %v969, 0
        %v982 = vsel %vm974, %v970, 0
        %v985 = vsel %vm974, %v971, 0
        %v988 = vsel %vm974, %v972, 0
        %v991 = vsel %vm974, %v973, 0
        %993 = vmatprep.subr.bf16.mxu0 0
        %994 = vmatpush1.bf16.msra.mxu0 %v870
        %995 = vmatprep.subr.bf16.mxu0 0
        %996 = vmatpush1.bf16.msra.mxu0 %v871
        %997 = vmatprep.subr.bf16.mxu0 0
        %998 = vmatpush1.bf16.msra.mxu0 0
        %999 = vmatprep.subr.bf16.mxu0 0
        %1000 = vmatpush1.bf16.msra.mxu0 0
        %1001 = vmatprep.subr.bf16.mxu0 0
        %1002 = vmatpush1.bf16.msra.mxu0 0
        %1003 = vmatprep.subr.bf16.mxu0 0
        %1004 = vmatpush1.bf16.msra.mxu0 0
        %1005 = vmatprep.subr.bf16.mxu0 0
        %1006 = vmatpush1.bf16.msra.mxu0 0
        %1007 = vmatprep.subr.bf16.mxu0 0
        %1008 = vmatpush1.bf16.msra.mxu0 0
        %1009 = vmatprep.subr.bf16.mxu0 0
        %1010 = vmatpush1.bf16.msra.mxu0 0
        %1011 = vmatprep.subr.bf16.mxu0 0
        %1012 = vmatpush1.bf16.msra.mxu0 0
        %1013 = vmatprep.subr.bf16.mxu0 0
        %1014 = vmatpush1.bf16.msra.mxu0 0
        %1015 = vmatprep.subr.bf16.mxu0 0
        %1016 = vmatpush1.bf16.msra.mxu0 0
        %1017 = vmatprep.subr.bf16.mxu0 0
        %1018 = vmatpush1.bf16.msra.mxu0 0
        %1019 = vmatprep.subr.bf16.mxu0 0
        %1020 = vmatpush1.bf16.msra.mxu0 0
        %1021 = vmatprep.subr.bf16.mxu0 0
        %1022 = vmatpush1.bf16.msra.mxu0 0
        %1023 = vmatprep.subr.bf16.mxu0 0
        %1024 = vmatpush1.bf16.msra.mxu0 0
        %1025 = vmatprep.mubr.bf16.mxu0 0
        %1026 = vmatmul.mubr.bf16.gmra.mrb[0].mxu0 %v976
        %v1027 = vpop.f32.mrb[0].mxu0
        %v1028 = vadd.f32 %v887, %v1027
        %v1029 = vpop.f32.mrb[0].mxu0
        %v1030 = vpop.f32.mrb[0].mxu0
        %v1031 = vadd.f32 %v892, %v1030
        %v1032 = vpop.f32.mrb[0].mxu0
        %1033 = vmatprep.mubr.bf16.mxu0 0
        %1034 = vmatmul.mubr.bf16.gmra.mrb[0].mxu0 %v979
        %v1035 = vpop.f32.mrb[0].mxu0
        %v1036 = vadd.f32 %v897, %v1035
        %v1037 = vpop.f32.mrb[0].mxu0
        %v1038 = vpop.f32.mrb[0].mxu0
        %v1039 = vadd.f32 %v902, %v1038
        %v1040 = vpop.f32.mrb[0].mxu0
        %1041 = vmatprep.mubr.bf16.mxu0 0
        %1042 = vmatmul.mubr.bf16.gmra.mrb[0].mxu0 %v982
        %v1043 = vpop.f32.mrb[0].mxu0
        %v1044 = vadd.f32 %v907, %v1043
        %v1045 = vpop.f32.mrb[0].mxu0
        %v1046 = vpop.f32.mrb[0].mxu0
        %v1047 = vadd.f32 %v912, %v1046
        %v1048 = vpop.f32.mrb[0].mxu0
        %1049 = vmatprep.mubr.bf16.mxu0 0
        %1050 = vmatmul.mubr.bf16.gmra.mrb[0].mxu0 %v985
        %v1051 = vpop.f32.mrb[0].mxu0
        %v1052 = vadd.f32 %v917, %v1051
        %v1053 = vpop.f32.mrb[0].mxu0
        %v1054 = vpop.f32.mrb[0].mxu0
        %v1055 = vadd.f32 %v922, %v1054
        %v1056 = vpop.f32.mrb[0].mxu0
        %1057 = vmatprep.mubr.bf16.mxu0 0
        %1058 = vmatmul.mubr.bf16.gmra.mrb[0].mxu0 %v988
        %v1059 = vpop.f32.mrb[0].mxu0
        %v1060 = vadd.f32 %v927, %v1059
        %v1061 = vpop.f32.mrb[0].mxu0
        %v1062 = vpop.f32.mrb[0].mxu0
        %v1063 = vadd.f32 %v932, %v1062
        %v1064 = vpop.f32.mrb[0].mxu0
        %1065 = vmatprep.mubr.bf16.mxu0 0
        %1066 = vmatmul.mubr.bf16.gmra.mrb[0].mxu0 %v991
        %v1067 = vpop.f32.mrb[0].mxu0
        %v1068 = vadd.f32 %v937, %v1067
        %v1069 = vpop.f32.mrb[0].mxu0
        %v1070 = vpop.f32.mrb[0].mxu0
        %v1071 = vadd.f32 %v942, %v1070
        %v1072 = vpop.f32.mrb[0].mxu0
        %1073 = vdwg.mxu0
        %s1074 = scalar_lea.vmem %s456, 64 [#allocation2]
        %v1075 = vld [vmem:[%s1074] sm:$0xff]
        %v1076 = vld [vmem:[%s1074 + $0x8] sm:$0xff]
        %v1077 = vld [vmem:[%s1074 + $0x10] sm:$0xff]
        %v1078 = vld [vmem:[%s1074 + $0x18] sm:$0xff]
        %v1079 = vld [vmem:[%s1074 + $0x20] sm:$0xff]
        %v1080 = vld [vmem:[%s1074 + $0x28] sm:$0xff]
        %v1081 = vld [vmem:[%s1074 + $0x30] sm:$0xff]
        %v1082 = vld [vmem:[%s1074 + $0x38] sm:$0xff]
        %v1083 = vpack.c.bf16 %v1076, %v1075
        %v1084 = vpack.c.bf16 %v1078, %v1077
        %v1085 = vpack.c.bf16 %v1080, %v1079
        %v1086 = vpack.c.bf16 %v1082, %v1081
        %s1087 = scalar_lea.vmem %s465, 64 [#allocation5]
        %v1088 = vld [vmem:[%s1087] sm:$0xff]
        %v1089 = vld [vmem:[%s1087 + $0x8] sm:$0xff]
        %v1090 = vld [vmem:[%s1087 + $0x10] sm:$0xff]
        %v1091 = vld [vmem:[%s1087 + $0x18] sm:$0xff]
        %v1092 = vld [vmem:[%s1087 + $0x20] sm:$0xff]
        %v1093 = vld [vmem:[%s1087 + $0x28] sm:$0xff]
        %v1094 = vld [vmem:[%s1087 + $0x30] sm:$0xff]
        %v1095 = vld [vmem:[%s1087 + $0x38] sm:$0xff]
        %v1096 = vpack.c.bf16 %v1089, %v1088
        %v1097 = vpack.c.bf16 %v1091, %v1090
        %v1098 = vpack.c.bf16 %v1093, %v1092
        %v1099 = vpack.c.bf16 %v1095, %v1094
        %s1100 = scalar_lea.vmem %s473, 64 [#allocation7]
        %v1101 = vld [vmem:[%s1100] sm:$0xff]
        %v1102 = vld [vmem:[%s1100 + $0x8] sm:$0xff]
        %v1103 = vld [vmem:[%s1100 + $0x10] sm:$0xff]
        %v1104 = vld [vmem:[%s1100 + $0x18] sm:$0xff]
        %v1105 = vld [vmem:[%s1100 + $0x20] sm:$0xff]
        %v1106 = vld [vmem:[%s1100 + $0x28] sm:$0xff]
        %v1107 = vld [vmem:[%s1100 + $0x30] sm:$0xff]
        %v1108 = vld [vmem:[%s1100 + $0x38] sm:$0xff]
        %v1109 = vpack.c.bf16 %v1102, %v1101
        %v1110 = vpack.c.bf16 %v1104, %v1103
        %v1111 = vpack.c.bf16 %v1106, %v1105
        %v1112 = vpack.c.bf16 %v1108, %v1107
        %1113 = vmatprep.subr.bf16.mxu0 0
        %1114 = vmatpush1.bf16.msra.mxu0 %v1083
        %1115 = vmatprep.subr.bf16.mxu0 0
        %1116 = vmatpush1.bf16.msra.mxu0 %v1084
        %1117 = vmatprep.subr.bf16.mxu0 0
        %1118 = vmatpush1.bf16.msra.mxu0 %v1085
        %1119 = vmatprep.subr.bf16.mxu0 0
        %1120 = vmatpush1.bf16.msra.mxu0 %v1086
        %1121 = vmatprep.subr.bf16.mxu0 0
        %1122 = vmatpush1.bf16.msra.mxu0 0
        %1123 = vmatprep.subr.bf16.mxu0 0
        %1124 = vmatpush1.bf16.msra.mxu0 0
        %1125 = vmatprep.subr.bf16.mxu0 0
        %1126 = vmatpush1.bf16.msra.mxu0 0
        %1127 = vmatprep.subr.bf16.mxu0 0
        %1128 = vmatpush1.bf16.msra.mxu0 0
        %1129 = vmatprep.subr.bf16.mxu0 0
        %1130 = vmatpush1.bf16.msra.mxu0 0
        %1131 = vmatprep.subr.bf16.mxu0 0
        %1132 = vmatpush1.bf16.msra.mxu0 0
        %1133 = vmatprep.subr.bf16.mxu0 0
        %1134 = vmatpush1.bf16.msra.mxu0 0
        %1135 = vmatprep.subr.bf16.mxu0 0
        %1136 = vmatpush1.bf16.msra.mxu0 0
        %1137 = vmatprep.subr.bf16.mxu0 0
        %1138 = vmatpush1.bf16.msra.mxu0 0
        %1139 = vmatprep.subr.bf16.mxu0 0
        %1140 = vmatpush1.bf16.msra.mxu0 0
        %1141 = vmatprep.subr.bf16.mxu0 0
        %1142 = vmatpush1.bf16.msra.mxu0 0
        %1143 = vmatprep.subr.bf16.mxu0 0
        %1144 = vmatpush1.bf16.msra.mxu0 0
        %1145 = vmatprep.mubr.bf16.mxu0 0
        %1146 = vmatmul.mubr.bf16.gmra.mrb[0].mxu0 %v608
        %v1147 = vpop.f32.mrb[0].mxu0
        %v1148 = vadd.f32 %v579, %v1147
        %v1149 = vpop.f32.mrb[0].mxu0
        %v1150 = vpop.f32.mrb[0].mxu0
        %v1151 = vadd.f32 %v584, %v1150
        %v1152 = vpop.f32.mrb[0].mxu0
        %1153 = vmatprep.mubr.bf16.mxu0 0
        %1154 = vmatmul.mubr.bf16.gmra.mrb[0].mxu0 %v611
        %v1155 = vpop.f32.mrb[0].mxu0
        %v1156 = vadd.f32 %v589, %v1155
        %v1157 = vpop.f32.mrb[0].mxu0
        %v1158 = vpop.f32.mrb[0].mxu0
        %v1159 = vadd.f32 %v594, %v1158
        %v1160 = vpop.f32.mrb[0].mxu0
        %1161 = vdwg.mxu0
        %v1162 = vmax.f32 %v1148, 0.0
        %v1163 = vmax.f32 %v1151, 0.0
        %v1164 = vmax.f32 %v1156, 0.0
        %v1165 = vmax.f32 %v1159, 0.0
        %1166 = vmatprep.subr.bf16.mxu0 0
        %1167 = vmatpush1.bf16.msra.mxu0 %v1109
        %1168 = vmatprep.subr.bf16.mxu0 0
        %1169 = vmatpush1.bf16.msra.mxu0 %v1110
        %1170 = vmatprep.subr.bf16.mxu0 0
        %1171 = vmatpush1.bf16.msra.mxu0 %v1111
        %1172 = vmatprep.subr.bf16.mxu0 0
        %1173 = vmatpush1.bf16.msra.mxu0 %v1112
        %1174 = vmatprep.subr.bf16.mxu0 0
        %1175 = vmatpush1.bf16.msra.mxu0 0
        %1176 = vmatprep.subr.bf16.mxu0 0
        %1177 = vmatpush1.bf16.msra.mxu0 0
        %1178 = vmatprep.subr.bf16.mxu0 0
        %1179 = vmatpush1.bf16.msra.mxu0 0
        %1180 = vmatprep.subr.bf16.mxu0 0
        %1181 = vmatpush1.bf16.msra.mxu0 0
        %1182 = vmatprep.subr.bf16.mxu0 0
        %1183 = vmatpush1.bf16.msra.mxu0 0
        %1184 = vmatprep.subr.bf16.mxu0 0
        %1185 = vmatpush1.bf16.msra.mxu0 0
        %1186 = vmatprep.subr.bf16.mxu0 0
        %1187 = vmatpush1.bf16.msra.mxu0 0
        %1188 = vmatprep.subr.bf16.mxu0 0
        %1189 = vmatpush1.bf16.msra.mxu0 0
        %1190 = vmatprep.subr.bf16.mxu0 0
        %1191 = vmatpush1.bf16.msra.mxu0 0
        %1192 = vmatprep.subr.bf16.mxu0 0
        %1193 = vmatpush1.bf16.msra.mxu0 0
        %1194 = vmatprep.subr.bf16.mxu0 0
        %1195 = vmatpush1.bf16.msra.mxu0 0
        %1196 = vmatprep.subr.bf16.mxu0 0
        %1197 = vmatpush1.bf16.msra.mxu0 0
        %1198 = vmatprep.mubr.bf16.mxu0 0
        %1199 = vmatmul.mubr.bf16.gmra.mrb[0].mxu0 %v702
        %v1200 = vpop.f32.mrb[0].mxu0
        %v1201 = vadd.f32 %v674, %v1200
        %v1202 = vpop.f32.mrb[0].mxu0
        %v1203 = vpop.f32.mrb[0].mxu0
        %v1204 = vadd.f32 %v679, %v1203
        %v1205 = vpop.f32.mrb[0].mxu0
        %1206 = vmatprep.mubr.bf16.mxu0 0
        %1207 = vmatmul.mubr.bf16.gmra.mrb[0].mxu0 %v705
        %v1208 = vpop.f32.mrb[0].mxu0
        %v1209 = vadd.f32 %v684, %v1208
        %v1210 = vpop.f32.mrb[0].mxu0
        %v1211 = vpop.f32.mrb[0].mxu0
        %v1212 = vadd.f32 %v689, %v1211
        %v1213 = vpop.f32.mrb[0].mxu0
        %1214 = vdwg.mxu0
        %v1215 = vmax.f32 %v1201, 0.0
        %v1216 = vmax.f32 %v1204, 0.0
        %v1217 = vmax.f32 %v1209, 0.0
        %v1218 = vmax.f32 %v1212, 0.0
        %1219 = vmatprep.subr.bf16.mxu0 0
        %1220 = vmatpush1.bf16.msra.mxu0 %v1096
        %1221 = vmatprep.subr.bf16.mxu0 0
        %1222 = vmatpush1.bf16.msra.mxu0 %v1097
        %1223 = vmatprep.subr.bf16.mxu0 0
        %1224 = vmatpush1.bf16.msra.mxu0 %v1098
        %1225 = vmatprep.subr.bf16.mxu0 0
        %1226 = vmatpush1.bf16.msra.mxu0 %v1099
        %1227 = vmatprep.subr.bf16.mxu0 0
        %1228 = vmatpush1.bf16.msra.mxu0 0
        %1229 = vmatprep.subr.bf16.mxu0 0
        %1230 = vmatpush1.bf16.msra.mxu0 0
        %1231 = vmatprep.subr.bf16.mxu0 0
        %1232 = vmatpush1.bf16.msra.mxu0 0
        %1233 = vmatprep.subr.bf16.mxu0 0
        %1234 = vmatpush1.bf16.msra.mxu0 0
        %1235 = vmatprep.subr.bf16.mxu0 0
        %1236 = vmatpush1.bf16.msra.mxu0 0
        %1237 = vmatprep.subr.bf16.mxu0 0
        %1238 = vmatpush1.bf16.msra.mxu0 0
        %1239 = vmatprep.subr.bf16.mxu0 0
        %1240 = vmatpush1.bf16.msra.mxu0 0
        %1241 = vmatprep.subr.bf16.mxu0 0
        %1242 = vmatpush1.bf16.msra.mxu0 0
        %1243 = vmatprep.subr.bf16.mxu0 0
        %1244 = vmatpush1.bf16.msra.mxu0 0
        %1245 = vmatprep.subr.bf16.mxu0 0
        %1246 = vmatpush1.bf16.msra.mxu0 0
        %1247 = vmatprep.subr.bf16.mxu0 0
        %1248 = vmatpush1.bf16.msra.mxu0 0
        %1249 = vmatprep.subr.bf16.mxu0 0
        %1250 = vmatpush1.bf16.msra.mxu0 0
        %1251 = vmatprep.mubr.bf16.mxu0 0
        %1252 = vmatmul.mubr.bf16.gmra.mrb[0].mxu0 %v796
        %v1253 = vpop.f32.mrb[0].mxu0
        %v1254 = vadd.f32 %v768, %v1253
        %v1255 = vpop.f32.mrb[0].mxu0
        %v1256 = vpop.f32.mrb[0].mxu0
        %v1257 = vadd.f32 %v773, %v1256
        %v1258 = vpop.f32.mrb[0].mxu0
        %1259 = vmatprep.mubr.bf16.mxu0 0
        %1260 = vmatmul.mubr.bf16.gmra.mrb[0].mxu0 %v799
        %v1261 = vpop.f32.mrb[0].mxu0
        %v1262 = vadd.f32 %v778, %v1261
        %v1263 = vpop.f32.mrb[0].mxu0
        %v1264 = vpop.f32.mrb[0].mxu0
        %v1265 = vadd.f32 %v783, %v1264
        %v1266 = vpop.f32.mrb[0].mxu0
        %1267 = vdwg.mxu0
        %v1268 = vmax.f32 %v1254, 0.0
        %v1269 = vmax.f32 %v1257, 0.0
        %v1270 = vmax.f32 %v1262, 0.0
        %v1271 = vmax.f32 %v1265, 0.0
        %v1272 = vmul.f32 %v1268, %v1215
        %v1273 = vmul.f32 %v1269, %v1216
        %v1274 = vmul.f32 %v1270, %v1217
        %v1275 = vmul.f32 %v1271, %v1218
        %v1276 = vpack.c.bf16 %v1163, %v1162
        %v1277 = vpack.c.bf16 %v1165, %v1164
        %1278 = vmatprep.subr.bf16.mxu0 0
        %1279 = vmatpush1.bf16.msra.mxu0 %v1276
        %1280 = vmatprep.subr.bf16.mxu0 0
        %1281 = vmatpush1.bf16.msra.mxu0 %v1277
        %1282 = vmatprep.subr.bf16.mxu0 0
        %1283 = vmatpush1.bf16.msra.mxu0 0
        %1284 = vmatprep.subr.bf16.mxu0 0
        %1285 = vmatpush1.bf16.msra.mxu0 0
        %1286 = vmatprep.subr.bf16.mxu0 0
        %1287 = vmatpush1.bf16.msra.mxu0 0
        %1288 = vmatprep.subr.bf16.mxu0 0
        %1289 = vmatpush1.bf16.msra.mxu0 0
        %1290 = vmatprep.subr.bf16.mxu0 0
        %1291 = vmatpush1.bf16.msra.mxu0 0
        %1292 = vmatprep.subr.bf16.mxu0 0
        %1293 = vmatpush1.bf16.msra.mxu0 0
        %1294 = vmatprep.subr.bf16.mxu0 0
        %1295 = vmatpush1.bf16.msra.mxu0 0
        %1296 = vmatprep.subr.bf16.mxu0 0
        %1297 = vmatpush1.bf16.msra.mxu0 0
        %1298 = vmatprep.subr.bf16.mxu0 0
        %1299 = vmatpush1.bf16.msra.mxu0 0
        %1300 = vmatprep.subr.bf16.mxu0 0
        %1301 = vmatpush1.bf16.msra.mxu0 0
        %1302 = vmatprep.subr.bf16.mxu0 0
        %1303 = vmatpush1.bf16.msra.mxu0 0
        %1304 = vmatprep.subr.bf16.mxu0 0
        %1305 = vmatpush1.bf16.msra.mxu0 0
        %1306 = vmatprep.subr.bf16.mxu0 0
        %1307 = vmatpush1.bf16.msra.mxu0 0
        %1308 = vmatprep.subr.bf16.mxu0 0
        %1309 = vmatpush1.bf16.msra.mxu0 0
        %1310 = vmatprep.mubr.bf16.mxu0 0
        %1311 = vmatmul.mubr.bf16.gmra.mrb[0].mxu0 %v976
        %v1312 = vpop.f32.mrb[0].mxu0
        %v1313 = vadd.f32 %v887, %v1312
        %v1314 = vpop.f32.mrb[0].mxu0
        %v1315 = vpop.f32.mrb[0].mxu0
        %v1316 = vadd.f32 %v892, %v1315
        %v1317 = vpop.f32.mrb[0].mxu0
        %1318 = vmatprep.mubr.bf16.mxu0 0
        %1319 = vmatmul.mubr.bf16.gmra.mrb[0].mxu0 %v979
        %v1320 = vpop.f32.mrb[0].mxu0
        %v1321 = vadd.f32 %v897, %v1320
        %v1322 = vpop.f32.mrb[0].mxu0
        %v1323 = vpop.f32.mrb[0].mxu0
        %v1324 = vadd.f32 %v902, %v1323
        %v1325 = vpop.f32.mrb[0].mxu0
        %1326 = vmatprep.mubr.bf16.mxu0 0
        %1327 = vmatmul.mubr.bf16.gmra.mrb[0].mxu0 %v982
        %v1328 = vpop.f32.mrb[0].mxu0
        %v1329 = vadd.f32 %v907, %v1328
        %v1330 = vpop.f32.mrb[0].mxu0
        %v1331 = vpop.f32.mrb[0].mxu0
        %v1332 = vadd.f32 %v912, %v1331
        %v1333 = vpop.f32.mrb[0].mxu0
        %1334 = vmatprep.mubr.bf16.mxu0 0
        %1335 = vmatmul.mubr.bf16.gmra.mrb[0].mxu0 %v985
        %v1336 = vpop.f32.mrb[0].mxu0
        %v1337 = vadd.f32 %v917, %v1336
        %v1338 = vpop.f32.mrb[0].mxu0
        %v1339 = vpop.f32.mrb[0].mxu0
        %v1340 = vadd.f32 %v922, %v1339
        %v1341 = vpop.f32.mrb[0].mxu0
        %1342 = vmatprep.mubr.bf16.mxu0 0
        %1343 = vmatmul.mubr.bf16.gmra.mrb[0].mxu0 %v988
        %v1344 = vpop.f32.mrb[0].mxu0
        %v1345 = vadd.f32 %v927, %v1344
        %v1346 = vpop.f32.mrb[0].mxu0
        %v1347 = vpop.f32.mrb[0].mxu0
        %v1348 = vadd.f32 %v932, %v1347
        %v1349 = vpop.f32.mrb[0].mxu0
        %1350 = vmatprep.mubr.bf16.mxu0 0
        %1351 = vmatmul.mubr.bf16.gmra.mrb[0].mxu0 %v991
        %v1352 = vpop.f32.mrb[0].mxu0
        %v1353 = vadd.f32 %v937, %v1352
        %v1354 = vpop.f32.mrb[0].mxu0
        %v1355 = vpop.f32.mrb[0].mxu0
        %v1356 = vadd.f32 %v942, %v1355
        %v1357 = vpop.f32.mrb[0].mxu0
        %1358 = vdwg.mxu0
        %v1359 = vmul.f32 %v1028, %v1044
        %v1360 = vrot.slane %v1359, 4
        %v1361 = vadd.f32 %v1359, %v1360
        %v1362 = vrot.slane %v1361, 2
        %v1363 = vadd.f32 %v1361, %v1362
        %v1364 = vrot.slane %v1363, 1
        %v1365 = vadd.f32 %v1363, %v1364
        %v1366 = vmul.f32 %v1031, %v1047
        %v1367 = vrot.slane %v1366, 4
        %v1368 = vadd.f32 %v1366, %v1367
        %v1369 = vrot.slane %v1368, 2
        %v1370 = vadd.f32 %v1368, %v1369
        %v1371 = vrot.slane %v1370, 1
        %v1372 = vadd.f32 %v1370, %v1371
        %v1373 = vmul.f32 %v1036, %v1052
        %v1374 = vrot.slane %v1373, 4
        %v1375 = vadd.f32 %v1373, %v1374
        %v1376 = vrot.slane %v1375, 2
        %v1377 = vadd.f32 %v1375, %v1376
        %v1378 = vrot.slane %v1377, 1
        %v1379 = vadd.f32 %v1377, %v1378
        %v1380 = vmul.f32 %v1039, %v1055
        %v1381 = vrot.slane %v1380, 4
        %v1382 = vadd.f32 %v1380, %v1381
        %v1383 = vrot.slane %v1382, 2
        %v1384 = vadd.f32 %v1382, %v1383
        %v1385 = vrot.slane %v1384, 1
        %v1386 = vadd.f32 %v1384, %v1385
        %v1387 = vmul.f32 %v1028, %v1329
        %v1388 = vrot.slane %v1387, 4
        %v1389 = vadd.f32 %v1387, %v1388
        %v1390 = vrot.slane %v1389, 2
        %v1391 = vadd.f32 %v1389, %v1390
        %v1392 = vrot.slane %v1391, 1
        %v1393 = vadd.f32 %v1391, %v1392
        %v1394 = vmul.f32 %v1031, %v1332
        %v1395 = vrot.slane %v1394, 4
        %v1396 = vadd.f32 %v1394, %v1395
        %v1397 = vrot.slane %v1396, 2
        %v1398 = vadd.f32 %v1396, %v1397
        %v1399 = vrot.slane %v1398, 1
        %v1400 = vadd.f32 %v1398, %v1399
        %v1401 = vmul.f32 %v1036, %v1337
        %v1402 = vrot.slane %v1401, 4
        %v1403 = vadd.f32 %v1401, %v1402
        %v1404 = vrot.slane %v1403, 2
        %v1405 = vadd.f32 %v1403, %v1404
        %v1406 = vrot.slane %v1405, 1
        %v1407 = vadd.f32 %v1405, %v1406
        %v1408 = vmul.f32 %v1039, %v1340
        %v1409 = vrot.slane %v1408, 4
        %v1410 = vadd.f32 %v1408, %v1409
        %v1411 = vrot.slane %v1410, 2
        %v1412 = vadd.f32 %v1410, %v1411
        %v1413 = vrot.slane %v1412, 1
        %v1414 = vadd.f32 %v1412, %v1413
        %v1415 = vmax.f32 %v1365, %v1393
        %v1416 = vsub.f32 %v1365, %v1415
        %v1417 = vmul.f32 %v1416, 1.442695
        %v1418 = vpow.pop %v1417
        %v1419 = vsub.f32 %v1393, %v1415
        %v1420 = vmul.f32 %v1419, 1.442695
        %v1421 = vpow.pop %v1420
        %v1422 = vadd.f32 %v1418, %v1421
        %v1423 = vrcp.pop %v1422
        %v1424 = vmul.f32 %v1418, %v1423
        %v1425 = vmul.f32 %v1424, %v1060
        %v1426 = vmul.f32 %v1421, %v1423
        %v1427 = vmul.f32 %v1426, %v1345
        %v1428 = vadd.f32 %v1425, %v1427
        %v1429 = vmax.f32 %v1372, %v1400
        %v1430 = vsub.f32 %v1372, %v1429
        %v1431 = vmul.f32 %v1430, 1.442695
        %v1432 = vpow.pop %v1431
        %v1433 = vsub.f32 %v1400, %v1429
        %v1434 = vmul.f32 %v1433, 1.442695
        %v1435 = vpow.pop %v1434
        %v1436 = vadd.f32 %v1432, %v1435
        %v1437 = vrcp.pop %v1436
        %v1438 = vmul.f32 %v1432, %v1437
        %v1439 = vmul.f32 %v1438, %v1063
        %v1440 = vmul.f32 %v1435, %v1437
        %v1441 = vmul.f32 %v1440, %v1348
        %v1442 = vadd.f32 %v1439, %v1441
        %v1443 = vmax.f32 %v1379, %v1407
        %v1444 = vsub.f32 %v1379, %v1443
        %v1445 = vmul.f32 %v1444, 1.442695
        %v1446 = vpow.pop %v1445
        %v1447 = vsub.f32 %v1407, %v1443
        %v1448 = vmul.f32 %v1447, 1.442695
        %v1449 = vpow.pop %v1448
        %v1450 = vadd.f32 %v1446, %v1449
        %v1451 = vrcp.pop %v1450
        %v1452 = vmul.f32 %v1446, %v1451
        %v1453 = vmul.f32 %v1452, %v1068
        %v1454 = vmul.f32 %v1449, %v1451
        %v1455 = vmul.f32 %v1454, %v1353
        %v1456 = vadd.f32 %v1453, %v1455
        %v1457 = vmax.f32 %v1386, %v1414
        %v1458 = vsub.f32 %v1386, %v1457
        %v1459 = vmul.f32 %v1458, 1.442695
        %v1460 = vpow.pop %v1459
        %v1461 = vsub.f32 %v1414, %v1457
        %v1462 = vmul.f32 %v1461, 1.442695
        %v1463 = vpow.pop %v1462
        %v1464 = vadd.f32 %v1460, %v1463
        %v1465 = vrcp.pop %v1464
        %v1466 = vmul.f32 %v1460, %v1465
        %v1467 = vmul.f32 %v1466, %v1071
        %v1468 = vmul.f32 %v1463, %v1465
        %v1469 = vmul.f32 %v1468, %v1356
        %v1470 = vadd.f32 %v1467, %v1469
        %v1471 = vld [vmem:[#allocation8] sm:$0xf]
        %v1472 = vld [vmem:[#allocation8 + $0x4] sm:$0xf]
        %v1473 = vld [vmem:[#allocation8 + $0x8] sm:$0xf]
        %v1474 = vld [vmem:[#allocation8 + $0xc] sm:$0xf]
        %v1475 = vpack.c.bf16 %v1442, %v1428
        %v1476 = vpack.c.bf16 %v1470, %v1456
        %v1477 = vld [vmem:[%s8] sm:$0xff]
        %v1478 = vld [vmem:[%s8 + $0x8] sm:$0xff]
        %v1479 = vld [vmem:[%s8 + $0x10] sm:$0xff]
        %v1480 = vld [vmem:[%s8 + $0x18] sm:$0xff]
        %1482 = vset.pattern.permute.xlu0 0
        %1483 = vperm.xlu0 %1482, %v1477
        %v1484 = vpop.permute.xlu0 %1483
        %1487 = vset.pattern.permute.xlu0 0
        %1488 = vperm.xlu0 %1487, %v1478
        %v1489 = vpop.permute.xlu0 %1488
        %1492 = vset.pattern.permute.xlu0 0
        %1493 = vperm.xlu0 %1492, %v1479
        %v1494 = vpop.permute.xlu0 %1493
        %1497 = vset.pattern.permute.xlu0 0
        %1498 = vperm.xlu0 %1497, %v1480
        %v1499 = vpop.permute.xlu0 %1498
        %v1505 = vunpack.c.l.b16 %v1471
        %v1506 = vunpack.c.l.b16 %v1472
        %v1507 = vunpack.c.l.b16 %v1473
        %v1508 = vunpack.c.l.b16 %v1474
        %v1509 = vpack.c.b16 %v1506, %v1505
        %v1510 = vpack.c.b16 %v1508, %v1507
        %v1512 = vsel %vm974, %v1509, 0
        %v1515 = vsel %vm974, %v1510, 0
        %1517 = vmatprep.subr.bf16.mxu0 0
        %1518 = vmatpush1.bf16.msra.mxu0 %v1475
        %1519 = vmatprep.subr.bf16.mxu0 0
        %1520 = vmatpush1.bf16.msra.mxu0 %v1476
        %1521 = vmatprep.subr.bf16.mxu0 0
        %1522 = vmatpush1.bf16.msra.mxu0 0
        %1523 = vmatprep.subr.bf16.mxu0 0
        %1524 = vmatpush1.bf16.msra.mxu0 0
        %1525 = vmatprep.subr.bf16.mxu0 0
        %1526 = vmatpush1.bf16.msra.mxu0 0
        %1527 = vmatprep.subr.bf16.mxu0 0
        %1528 = vmatpush1.bf16.msra.mxu0 0
        %1529 = vmatprep.subr.bf16.mxu0 0
        %1530 = vmatpush1.bf16.msra.mxu0 0
        %1531 = vmatprep.subr.bf16.mxu0 0
        %1532 = vmatpush1.bf16.msra.mxu0 0
        %1533 = vmatprep.subr.bf16.mxu0 0
        %1534 = vmatpush1.bf16.msra.mxu0 0
        %1535 = vmatprep.subr.bf16.mxu0 0
        %1536 = vmatpush1.bf16.msra.mxu0 0
        %1537 = vmatprep.subr.bf16.mxu0 0
        %1538 = vmatpush1.bf16.msra.mxu0 0
        %1539 = vmatprep.subr.bf16.mxu0 0
        %1540 = vmatpush1.bf16.msra.mxu0 0
        %1541 = vmatprep.subr.bf16.mxu0 0
        %1542 = vmatpush1.bf16.msra.mxu0 0
        %1543 = vmatprep.subr.bf16.mxu0 0
        %1544 = vmatpush1.bf16.msra.mxu0 0
        %1545 = vmatprep.subr.bf16.mxu0 0
        %1546 = vmatpush1.bf16.msra.mxu0 0
        %1547 = vmatprep.subr.bf16.mxu0 0
        %1548 = vmatpush1.bf16.msra.mxu0 0
        %1549 = vmatprep.mubr.bf16.mxu0 0
        %1550 = vmatmul.mubr.bf16.gmra.mrb[0].mxu0 %v1512
        %v1551 = vpop.f32.mrb[0].mxu0
        %v1552 = vadd.f32 %v1484, %v1551
        %v1553 = vpop.f32.mrb[0].mxu0
        %v1554 = vpop.f32.mrb[0].mxu0
        %v1555 = vadd.f32 %v1489, %v1554
        %v1556 = vpop.f32.mrb[0].mxu0
        %1557 = vmatprep.mubr.bf16.mxu0 0
        %1558 = vmatmul.mubr.bf16.gmra.mrb[0].mxu0 %v1515
        %v1559 = vpop.f32.mrb[0].mxu0
        %v1560 = vadd.f32 %v1494, %v1559
        %v1561 = vpop.f32.mrb[0].mxu0
        %v1562 = vpop.f32.mrb[0].mxu0
        %v1563 = vadd.f32 %v1499, %v1562
        %v1564 = vpop.f32.mrb[0].mxu0
        %1565 = vdwg.mxu0
        %v1566 = vadd.f32 %v1552, %v854
        %v1567 = vadd.f32 %v1555, %v855
        %v1568 = vadd.f32 %v1560, %v856
        %v1569 = vadd.f32 %v1563, %v857
        %1570 = vst [vmem:[%s519] sm:$0xff] %v1566
        %1571 = vst [vmem:[%s519 + $0x8] sm:$0xff] %v1567
        %1572 = vst [vmem:[%s519 + $0x10] sm:$0xff] %v1568
        %1573 = vst [vmem:[%s519 + $0x18] sm:$0xff] %v1569
        %v1574 = vmul.f32 %v1313, %v1044
        %v1575 = vrot.slane %v1574, 4
        %v1576 = vadd.f32 %v1574, %v1575
        %v1577 = vrot.slane %v1576, 2
        %v1578 = vadd.f32 %v1576, %v1577
        %v1579 = vrot.slane %v1578, 1
        %v1580 = vadd.f32 %v1578, %v1579
        %v1581 = vmul.f32 %v1316, %v1047
        %v1582 = vrot.slane %v1581, 4
        %v1583 = vadd.f32 %v1581, %v1582
        %v1584 = vrot.slane %v1583, 2
        %v1585 = vadd.f32 %v1583, %v1584
        %v1586 = vrot.slane %v1585, 1
        %v1587 = vadd.f32 %v1585, %v1586
        %v1588 = vmul.f32 %v1321, %v1052
        %v1589 = vrot.slane %v1588, 4
        %v1590 = vadd.f32 %v1588, %v1589
        %v1591 = vrot.slane %v1590, 2
        %v1592 = vadd.f32 %v1590, %v1591
        %v1593 = vrot.slane %v1592, 1
        %v1594 = vadd.f32 %v1592, %v1593
        %v1595 = vmul.f32 %v1324, %v1055
        %v1596 = vrot.slane %v1595, 4
        %v1597 = vadd.f32 %v1595, %v1596
        %v1598 = vrot.slane %v1597, 2
        %v1599 = vadd.f32 %v1597, %v1598
        %v1600 = vrot.slane %v1599, 1
        %v1601 = vadd.f32 %v1599, %v1600
        %v1602 = vmul.f32 %v1313, %v1329
        %v1603 = vrot.slane %v1602, 4
        %v1604 = vadd.f32 %v1602, %v1603
        %v1605 = vrot.slane %v1604, 2
        %v1606 = vadd.f32 %v1604, %v1605
        %v1607 = vrot.slane %v1606, 1
        %v1608 = vadd.f32 %v1606, %v1607
        %v1609 = vmul.f32 %v1316, %v1332
        %v1610 = vrot.slane %v1609, 4
        %v1611 = vadd.f32 %v1609, %v1610
        %v1612 = vrot.slane %v1611, 2
        %v1613 = vadd.f32 %v1611, %v1612
        %v1614 = vrot.slane %v1613, 1
        %v1615 = vadd.f32 %v1613, %v1614
        %v1616 = vmul.f32 %v1321, %v1337
        %v1617 = vrot.slane %v1616, 4
        %v1618 = vadd.f32 %v1616, %v1617
        %v1619 = vrot.slane %v1618, 2
        %v1620 = vadd.f32 %v1618, %v1619
        %v1621 = vrot.slane %v1620, 1
        %v1622 = vadd.f32 %v1620, %v1621
        %v1623 = vmul.f32 %v1324, %v1340
        %v1624 = vrot.slane %v1623, 4
        %v1625 = vadd.f32 %v1623, %v1624
        %v1626 = vrot.slane %v1625, 2
        %v1627 = vadd.f32 %v1625, %v1626
        %v1628 = vrot.slane %v1627, 1
        %v1629 = vadd.f32 %v1627, %v1628
        %v1630 = vmax.f32 %v1580, %v1608
        %v1631 = vsub.f32 %v1580, %v1630
        %v1632 = vmul.f32 %v1631, 1.442695
        %v1633 = vpow.pop %v1632
        %v1634 = vsub.f32 %v1608, %v1630
        %v1635 = vmul.f32 %v1634, 1.442695
        %v1636 = vpow.pop %v1635
        %v1637 = vadd.f32 %v1633, %v1636
        %v1638 = vrcp.pop %v1637
        %v1639 = vmul.f32 %v1633, %v1638
        %v1640 = vmul.f32 %v1639, %v1060
        %v1641 = vmul.f32 %v1636, %v1638
        %v1642 = vmul.f32 %v1641, %v1345
        %v1643 = vadd.f32 %v1640, %v1642
        %v1644 = vmax.f32 %v1587, %v1615
        %v1645 = vsub.f32 %v1587, %v1644
        %v1646 = vmul.f32 %v1645, 1.442695
        %v1647 = vpow.pop %v1646
        %v1648 = vsub.f32 %v1615, %v1644
        %v1649 = vmul.f32 %v1648, 1.442695
        %v1650 = vpow.pop %v1649
        %v1651 = vadd.f32 %v1647, %v1650
        %v1652 = vrcp.pop %v1651
        %v1653 = vmul.f32 %v1647, %v1652
        %v1654 = vmul.f32 %v1653, %v1063
        %v1655 = vmul.f32 %v1650, %v1652
        %v1656 = vmul.f32 %v1655, %v1348
        %v1657 = vadd.f32 %v1654, %v1656
        %v1658 = vmax.f32 %v1594, %v1622
        %v1659 = vsub.f32 %v1594, %v1658
        %v1660 = vmul.f32 %v1659, 1.442695
        %v1661 = vpow.pop %v1660
        %v1662 = vsub.f32 %v1622, %v1658
        %v1663 = vmul.f32 %v1662, 1.442695
        %v1664 = vpow.pop %v1663
        %v1665 = vadd.f32 %v1661, %v1664
        %v1666 = vrcp.pop %v1665
        %v1667 = vmul.f32 %v1661, %v1666
        %v1668 = vmul.f32 %v1667, %v1068
        %v1669 = vmul.f32 %v1664, %v1666
        %v1670 = vmul.f32 %v1669, %v1353
        %v1671 = vadd.f32 %v1668, %v1670
        %v1672 = vmax.f32 %v1601, %v1629
        %v1673 = vsub.f32 %v1601, %v1672
        %v1674 = vmul.f32 %v1673, 1.442695
        %v1675 = vpow.pop %v1674
        %v1676 = vsub.f32 %v1629, %v1672
        %v1677 = vmul.f32 %v1676, 1.442695
        %v1678 = vpow.pop %v1677
        %v1679 = vadd.f32 %v1675, %v1678
        %v1680 = vrcp.pop %v1679
        %v1681 = vmul.f32 %v1675, %v1680
        %v1682 = vmul.f32 %v1681, %v1071
        %v1683 = vmul.f32 %v1678, %v1680
        %v1684 = vmul.f32 %v1683, %v1356
        %v1685 = vadd.f32 %v1682, %v1684
        %v1686 = vld [vmem:[#allocation8] sm:$0xf]
        %v1687 = vld [vmem:[#allocation8 + $0x4] sm:$0xf]
        %v1688 = vld [vmem:[#allocation8 + $0x8] sm:$0xf]
        %v1689 = vld [vmem:[#allocation8 + $0xc] sm:$0xf]
        %v1690 = vpack.c.bf16 %v1657, %v1643
        %v1691 = vpack.c.bf16 %v1685, %v1671
        %v1692 = vld [vmem:[%s8] sm:$0xff]
        %v1693 = vld [vmem:[%s8 + $0x8] sm:$0xff]
        %v1694 = vld [vmem:[%s8 + $0x10] sm:$0xff]
        %v1695 = vld [vmem:[%s8 + $0x18] sm:$0xff]
        %1697 = vset.pattern.permute.xlu0 0
        %1698 = vperm.xlu0 %1697, %v1692
        %v1699 = vpop.permute.xlu0 %1698
        %1702 = vset.pattern.permute.xlu0 0
        %1703 = vperm.xlu0 %1702, %v1693
        %v1704 = vpop.permute.xlu0 %1703
        %1707 = vset.pattern.permute.xlu0 0
        %1708 = vperm.xlu0 %1707, %v1694
        %v1709 = vpop.permute.xlu0 %1708
        %1712 = vset.pattern.permute.xlu0 0
        %1713 = vperm.xlu0 %1712, %v1695
        %v1714 = vpop.permute.xlu0 %1713
        %v1720 = vunpack.c.l.b16 %v1686
        %v1721 = vunpack.c.l.b16 %v1687
        %v1722 = vunpack.c.l.b16 %v1688
        %v1723 = vunpack.c.l.b16 %v1689
        %v1724 = vpack.c.b16 %v1721, %v1720
        %v1725 = vpack.c.b16 %v1723, %v1722
        %v1727 = vsel %vm974, %v1724, 0
        %v1730 = vsel %vm974, %v1725, 0
        %1732 = vmatprep.subr.bf16.mxu0 0
        %1733 = vmatpush1.bf16.msra.mxu0 %v1690
        %1734 = vmatprep.subr.bf16.mxu0 0
        %1735 = vmatpush1.bf16.msra.mxu0 %v1691
        %1736 = vmatprep.subr.bf16.mxu0 0
        %1737 = vmatpush1.bf16.msra.mxu0 0
        %1738 = vmatprep.subr.bf16.mxu0 0
        %1739 = vmatpush1.bf16.msra.mxu0 0
        %1740 = vmatprep.subr.bf16.mxu0 0
        %1741 = vmatpush1.bf16.msra.mxu0 0
        %1742 = vmatprep.subr.bf16.mxu0 0
        %1743 = vmatpush1.bf16.msra.mxu0 0
        %1744 = vmatprep.subr.bf16.mxu0 0
        %1745 = vmatpush1.bf16.msra.mxu0 0
        %1746 = vmatprep.subr.bf16.mxu0 0
        %1747 = vmatpush1.bf16.msra.mxu0 0
        %1748 = vmatprep.subr.bf16.mxu0 0
        %1749 = vmatpush1.bf16.msra.mxu0 0
        %1750 = vmatprep.subr.bf16.mxu0 0
        %1751 = vmatpush1.bf16.msra.mxu0 0
        %1752 = vmatprep.subr.bf16.mxu0 0
        %1753 = vmatpush1.bf16.msra.mxu0 0
        %1754 = vmatprep.subr.bf16.mxu0 0
        %1755 = vmatpush1.bf16.msra.mxu0 0
        %1756 = vmatprep.subr.bf16.mxu0 0
        %1757 = vmatpush1.bf16.msra.mxu0 0
        %1758 = vmatprep.subr.bf16.mxu0 0
        %1759 = vmatpush1.bf16.msra.mxu0 0
        %1760 = vmatprep.subr.bf16.mxu0 0
        %1761 = vmatpush1.bf16.msra.mxu0 0
        %1762 = vmatprep.subr.bf16.mxu0 0
        %1763 = vmatpush1.bf16.msra.mxu0 0
        %1764 = vmatprep.mubr.bf16.mxu0 0
        %1765 = vmatmul.mubr.bf16.gmra.mrb[0].mxu0 %v1727
        %v1766 = vpop.f32.mrb[0].mxu0
        %v1767 = vadd.f32 %v1699, %v1766
        %v1768 = vpop.f32.mrb[0].mxu0
        %v1769 = vpop.f32.mrb[0].mxu0
        %v1770 = vadd.f32 %v1704, %v1769
        %v1771 = vpop.f32.mrb[0].mxu0
        %1772 = vmatprep.mubr.bf16.mxu0 0
        %1773 = vmatmul.mubr.bf16.gmra.mrb[0].mxu0 %v1730
        %v1774 = vpop.f32.mrb[0].mxu0
        %v1775 = vadd.f32 %v1709, %v1774
        %v1776 = vpop.f32.mrb[0].mxu0
        %v1777 = vpop.f32.mrb[0].mxu0
        %v1778 = vadd.f32 %v1714, %v1777
        %v1779 = vpop.f32.mrb[0].mxu0
        %1780 = vdwg.mxu0
        %v1781 = vadd.f32 %v1767, %v1272
        %v1782 = vadd.f32 %v1770, %v1273
        %v1783 = vadd.f32 %v1775, %v1274
        %v1784 = vadd.f32 %v1778, %v1275
        %s1785 = scalar_lea.vmem %s519, 32 [#allocation9]
        %1786 = vst [vmem:[%s1785] sm:$0xff] %v1781
        %1787 = vst [vmem:[%s1785 + $0x8] sm:$0xff] %v1782
        %1788 = vst [vmem:[%s1785 + $0x10] sm:$0xff] %v1783
        %1789 = vst [vmem:[%s1785 + $0x18] sm:$0xff] %v1784
        %s1790 = sand.u32 %s243, 1
        %s1791 = scalar_lea.sflag [#allocation4], %s1790
        %s1792 = sand.u32 %s243, 1
        %s1793 = smul.addr %s1792, 64
        %s1794 = scalar_lea.vmem [#allocation9], %s1793
        // Predicated region
        $region107: #{tpu_custom_call.1} parent=89 // pred_check
          %p1795 = pneg %p253
        $region108: #{tpu_custom_call.1} parent=89 // pred_check_branch
          %1797 = sbr.rel (%p1795) target = $region110
        $region109: #{tpu_custom_call.1} parent=89 // pred_region
          %s1799 = ssub.s32 1024, 1024
          %1800 = vsyncadd %s1791, %s1799
          %s1801 = smul.addr %s29, 128
          %s1802 = scalar_lea.hbm %s9, %s1801
          %s1803 = sshll.u32 %s1794, 4
          %s1804 = int_to_ptr.vmem [resolvable:$true] %s1803
          %1809 = dma.vmem_to_hbm [thread:$0]  %s1804, 1024, %s1802, %s1791, 128, 256, 8
        $region110: #{tpu_custom_call.1} parent=89 // pred_fallthru
          _
      $region90: #{tpu_custom_call.1} parent=5 // pred_fallthru
        _
      %p1810 = scmp.le.s32.totalorder 2, %s24
      // Predicated region
      $region111: #{tpu_custom_call.1} parent=5 // pred_check
        %p1811 = pneg %p1810
      $region112: #{tpu_custom_call.1} parent=5 // pred_check_branch
        %1813 = sbr.rel (%p1811) target = $region114
      $region113: #{tpu_custom_call.1} parent=5 // pred_region
        %s1814 = ssub.s32 %s24, 2
        // Predicated region
        $region115: #{tpu_custom_call.1} parent=113 // pred_check
          %p1815 = pneg %p259
        $region116: #{tpu_custom_call.1} parent=113 // pred_check_branch
          %1817 = sbr.rel (%p1815) target = $region118
        $region117: #{tpu_custom_call.1} parent=113 // pred_region
          %s1818 = sand.u32 %s244, 1
          %s1819 = scalar_lea.sflag [#allocation4], %s1818
          %s1820 = sand.u32 %s244, 1
          %s1821 = smul.addr %s1820, 64
          %s1822 = scalar_lea.vmem [#allocation9], %s1821
          %1823 = dma.done %s1819, 1024
        $region118: #{tpu_custom_call.1} parent=113 // pred_fallthru
          _
      $region114: #{tpu_custom_call.1} parent=5 // pred_fallthru
        _
    $region6: #{tpu_custom_call.1} parent=1 // loop_footer
      %s28 = sadd.s32 1, %s24
    $region7: #{tpu_custom_call.1} parent=1 // loop_footer_branch
      %23 = sbr.rel target = $region3
    $region8: #{tpu_custom_call.1} parent=1 // loop_exit
      _
    %1824 = vsyncpa [#allocation3], 1
    %s1825 = scalar_lea.sflag [#allocation3], 1
    %1826 = vsyncpa %s1825, 1
    %1827 = vsyncpa [#allocation6], 1
    %s1828 = scalar_lea.sflag [#allocation6], 1
    %1829 = vsyncpa %s1828, 1
    %1830 = vsyncpa [#allocation4], 1
    %s1831 = scalar_lea.sflag [#allocation4], 1
    %1832 = vsyncpa %s1831, 1

</llo_original>
